<compile_context>
chip_gen: v6e
topology: v6e:2x2x1
jax: 0.10.0
libtpu: 0.0.40
codegen_flags: <defaults>
</compile_context>

<pallas_src>
import functools

import jax
import jax.numpy as jnp
from jax import lax
from jax.experimental import pallas as pl
from jax.experimental.pallas import tpu as pltpu


# ------------------------------ helpers ---------------------------------------

def _round_up(x, m):
    return ((x + m - 1) // m) * m


def _pad_gate_cols(w, H, Hp):
    """(in, 4*H) -> (in, 4*Hp): each PyTorch gate block [i,f,g,o] lane-aligned."""
    if H == Hp:
        return w
    blocks = [jnp.pad(w[:, k * H:(k + 1) * H], ((0, 0), (0, Hp - H)))
              for k in range(4)]
    return jnp.concatenate(blocks, axis=1)


def _pad_rows(w, H, Hp):
    return w if H == Hp else jnp.pad(w, ((0, Hp - H), (0, 0)))


# ----------------------------- Pallas kernels ----------------------------------

def fact_lstm_kernel(maxlen_ref, x_ref, len_ref,
                     wih0_ref, whh0_ref, b0_ref,
                     wih1_ref, whh1_ref, b1_ref,
                     h0_ref, c0_ref, h1_ref, c1_ref,
                     xg_ref, *, bb):
    """2-layer fact LSTM over one batch block of bb rows (rounds folded in).

    x_ref:   (T*bb, E)  rows ordered t*bb + local_batch
    len_ref: (bb, 1)    int32 valid lengths (0 for padded rows)
    xg_ref:  (T*bb, 4*Hp) VMEM scratch for the precomputed layer-0 input gates
    """
    Hp = whh0_ref.shape[0]
    G = 4 * Hp

    # (1) Layer-0 input transform for ALL timesteps as one MXU matmul (off the
    #     serial recurrence); bias b0 folded in here.
    xg_ref[...] = (jnp.dot(x_ref[...], wih0_ref[...],
                           preferred_element_type=jnp.float32) + b0_ref[...])

    # (2) Hoisted out of the time loop: lengths and the layer-1 bias broadcast.
    lens = len_ref[...]                                       # (bb, 1) int32
    b1b = jnp.broadcast_to(b1_ref[...], (bb, G))              # (bb, 4*Hp)

    zeros = jnp.zeros((bb, Hp), jnp.float32)

    def step(t, carry):
        h0, c0, h1, c1 = carry
        # dynamicRNN mask: freeze (h, c) once t >= length of that row.
        m = jnp.broadcast_to(t < lens, (bb, Hp))

        # ---- factRNN layer 0: only the recurrent matmul is on the serial path
        base = pl.multiple_of(t * bb, 8)
        g0 = xg_ref[pl.ds(base, bb), :] + jnp.dot(
            h0, whh0_ref[...], preferred_element_type=jnp.float32)
        i0 = jax.nn.sigmoid(g0[:, 0 * Hp:1 * Hp])
        f0 = jax.nn.sigmoid(g0[:, 1 * Hp:2 * Hp])
        gg0 = jnp.tanh(g0[:, 2 * Hp:3 * Hp])
        o0 = jax.nn.sigmoid(g0[:, 3 * Hp:4 * Hp])
        c0n = f0 * c0 + i0 * gg0
        h0n = o0 * jnp.tanh(c0n)
        h0 = jnp.where(m, h0n, h0)
        c0 = jnp.where(m, c0n, c0)

        # ---- factRNN layer 1 (input is recurrent, so both matmuls stay here)
        g1 = (jnp.dot(h0, wih1_ref[...], preferred_element_type=jnp.float32)
              + jnp.dot(h1, whh1_ref[...], preferred_element_type=jnp.float32)
              + b1b)
        i1 = jax.nn.sigmoid(g1[:, 0 * Hp:1 * Hp])
        f1 = jax.nn.sigmoid(g1[:, 1 * Hp:2 * Hp])
        gg1 = jnp.tanh(g1[:, 2 * Hp:3 * Hp])
        o1 = jax.nn.sigmoid(g1[:, 3 * Hp:4 * Hp])
        c1n = f1 * c1 + i1 * gg1
        h1n = o1 * jnp.tanh(c1n)
        h1 = jnp.where(m, h1n, h1)
        c1 = jnp.where(m, c1n, c1)
        return h0, c0, h1, c1

    # (3) Serial step count bounded by this block's max valid length, not the
    #     padded T (scalar-prefetched per-block bound).
    t_max = maxlen_ref[pl.program_id(0)]
    h0, c0, h1, c1 = lax.fori_loop(0, t_max, step, (zeros, zeros, zeros, zeros))

    h0_ref[...] = h0
    c0_ref[...] = c0
    h1_ref[...] = h1
    c1_ref[...] = c1


def dialog_kernel(h1_ref, wihd_ref, whhd_ref, bd_ref, dh_ref):
    """dialogRNN LSTMCell over rounds.  h1_ref: (R*Np, Hp) fact embeddings."""
    Np, Hp = dh_ref.shape
    R = h1_ref.shape[0] // Np

    # Input transform for every round up front (inputs are not recurrent).
    xg = jnp.dot(h1_ref[...], wihd_ref[...],
                 preferred_element_type=jnp.float32) + bd_ref[...]   # (R*Np, 4Hp)

    dh = jnp.zeros((Np, Hp), jnp.float32)
    dc = jnp.zeros((Np, Hp), jnp.float32)
    for r in range(R):   # R is small & static: fully unrolled, static slices
        g = xg[r * Np:(r + 1) * Np, :] + jnp.dot(
            dh, whhd_ref[...], preferred_element_type=jnp.float32)
        i = jax.nn.sigmoid(g[:, 0 * Hp:1 * Hp])
        f = jax.nn.sigmoid(g[:, 1 * Hp:2 * Hp])
        gg = jnp.tanh(g[:, 2 * Hp:3 * Hp])
        o = jax.nn.sigmoid(g[:, 3 * Hp:4 * Hp])
        dc = f * dc + i * gg
        dh = o * jnp.tanh(dc)
    dh_ref[...] = dh


# ------------------------------- Wrapper ----------------------------------------

def qa_encoder_forward(qa_tok, qa_lens, params, *, batch_block=256):
    """Pallas forward of QA_Encoder (numLayers == 2).

    qa_tok:  (R, N, T) int32 right-padded concatenated QA tokens per round.
    qa_lens: (R, N) int32 valid lengths.
    Returns (H_link, C_link), each (2, N, H).
    """
    R, N, T = qa_tok.shape
    emb = params["emb"]
    E = emb.shape[1]
    H = params["whh0T"].shape[0]
    Hp = _round_up(H, 128)            # lane-align each LSTM gate block
    G = 4 * Hp
    Np = _round_up(N, 8)              # sublane-align per-round batch
    B = R * Np                        # rounds folded into the fact-LSTM batch
    bb = _round_up(min(batch_block, B), 8)
    nblk = -(-B // bb)
    B_pad = nblk * bb

    # ---- plain-JAX glue: embedding gather + layout -----------------------------
    x = jnp.take(emb, qa_tok, axis=0)                   # (R, N, T, E)  wordEmbed
    x = jnp.transpose(x, (2, 0, 1, 3))                  # (T, R, N, E)  time-major
    x = jnp.pad(x, ((0, 0), (0, 0), (0, Np - N), (0, 0)))
    x = x.reshape(T, B, E)
    x = jnp.pad(x, ((0, 0), (0, B_pad - B), (0, 0)))
    # one contiguous (T*bb, E) slab per batch block: row = t*bb + local_batch
    x = x.reshape(T, nblk, bb, E).transpose(1, 0, 2, 3).reshape(nblk, T * bb, E)
    x = x.astype(jnp.float32)

    lens = jnp.pad(qa_lens.astype(jnp.int32), ((0, 0), (0, Np - N)))
    lens = jnp.pad(lens.reshape(B), (0, B_pad - B))
    max_lens = lens.reshape(nblk, bb).max(axis=1).astype(jnp.int32)   # per block
    lens = lens.reshape(B_pad, 1)

    # ---- gate-padded (lane-aligned), pre-transposed weights --------------------
    wih0 = _pad_gate_cols(params["wih0T"], H, Hp)                       # (E, G)
    whh0 = _pad_gate_cols(_pad_rows(params["whh0T"], H, Hp), H, Hp)     # (Hp, G)
    b0 = _pad_gate_cols(params["b0"], H, Hp)                            # (1, G)
    wih1 = _pad_gate_cols(_pad_rows(params["wih1T"], H, Hp), H, Hp)
    whh1 = _pad_gate_cols(_pad_rows(params["whh1T"], H, Hp), H, Hp)
    b1 = _pad_gate_cols(params["b1"], H, Hp)
    wihd = _pad_gate_cols(_pad_rows(params["wihdT"], H, Hp), H, Hp)
    whhd = _pad_gate_cols(_pad_rows(params["whhdT"], H, Hp), H, Hp)
    bd = _pad_gate_cols(params["bd"], H, Hp)

    # ---- kernel 1: factRNN over all (round x batch) rows at once ---------------
    def full(shape):
        return pl.BlockSpec(shape, lambda i, ml, _n=len(shape): (0,) * _n)

    grid_spec = pltpu.PrefetchScalarGridSpec(
        num_scalar_prefetch=1,                 # per-block max lengths in SMEM
        grid=(nblk,),
        in_specs=[
            pl.BlockSpec((None, T * bb, E), lambda i, ml: (i, 0, 0)),
            pl.BlockSpec((bb, 1), lambda i, ml: (i, 0)),
            # Constant index maps: weight blocks are revisited, not re-streamed,
            # across grid steps.
            full((E, G)), full((Hp, G)), full((1, G)),       # factRNN layer 0
            full((Hp, G)), full((Hp, G)), full((1, G)),      # factRNN layer 1
        ],
        out_specs=[pl.BlockSpec((bb, Hp), lambda i, ml: (i, 0))
                   for _ in range(4)],
        scratch_shapes=[pltpu.VMEM((T * bb, G), jnp.float32)],
    )
    h0_all, c0_all, h1_all, c1_all = pl.pallas_call(
        functools.partial(fact_lstm_kernel, bb=bb),
        grid_spec=grid_spec,
        out_shape=[jax.ShapeDtypeStruct((B_pad, Hp), jnp.float32)] * 4,
        compiler_params=pltpu.CompilerParams(
            dimension_semantics=("parallel",)),   # batch blocks are independent
    )(max_lens, x, lens, wih0, whh0, b0, wih1, whh1, b1)

    # ---- kernel 2: tiny sequential dialogRNN LSTMCell over rounds ---------------
    dlg_h = pl.pallas_call(
        dialog_kernel,
        out_shape=jax.ShapeDtypeStruct((Np, Hp), jnp.float32),
    )(h1_all[:B], wihd, whhd, bd)

    # ---- H_link / C_link as in QA_Encoder.forward (numLayers == 2) -------------
    last = (R - 1) * Np
    h0_last = h0_all[last:last + N, :H]
    c0_last = c0_all[last:last + N, :H]
    c1_last = c1_all[last:last + N, :H]
    H_link = jnp.stack([h0_last, dlg_h[:N, :H]], axis=0)   # (2, N, H)
    C_link = jnp.stack([c0_last, c1_last], axis=0)         # (2, N, H)
    return H_link, C_link


# -------------------------------- JAX glue ---------------------------------------

def init_params(key, V, E, H):
    k = 1.0 / float(H) ** 0.5
    keys = jax.random.split(key, 13)
    u = lambda kk, shape: jax.random.uniform(kk, shape, jnp.float32, -k, k)
    emb = (jax.random.normal(keys[0], (V, E), jnp.float32) * 0.1).at[0].set(0.0)
    wih0, whh0 = u(keys[1], (4 * H, E)), u(keys[2], (4 * H, H))
    bih0, bhh0 = u(keys[3], (4 * H,)), u(keys[4], (4 * H,))
    wih1, whh1 = u(keys[5], (4 * H, H)), u(keys[6], (4 * H, H))
    bih1, bhh1 = u(keys[7], (4 * H,)), u(keys[8], (4 * H,))
    wihd, whhd = u(keys[9], (4 * H, H)), u(keys[10], (4 * H, H))
    bihd, bhhd = u(keys[11], (4 * H,)), u(keys[12], (4 * H,))
    return dict(
        emb=emb,
        wih0T=wih0.T, whh0T=whh0.T, b0=(bih0 + bhh0)[None, :],
        wih1T=wih1.T, whh1T=whh1.T, b1=(bih1 + bhh1)[None, :],
        wihdT=wihd.T, whhdT=whhd.T, bd=(bihd + bhhd)[None, :],
    )


def concat_padded_sequences(ques, qlens, ans, alens):
    """utils.concatPaddedSequences with padding='right'."""
    R, N, Tq = ques.shape
    Ta = ans.shape[-1]
    T = Tq + Ta
    t = jnp.broadcast_to(jnp.arange(T)[None, None, :], (R, N, T))
    ql, al = qlens[..., None], alens[..., None]
    q_tok = jnp.take_along_axis(ques, jnp.clip(t, 0, Tq - 1), axis=-1)
    a_tok = jnp.take_along_axis(ans, jnp.clip(t - ql, 0, Ta - 1), axis=-1)
    qa = jnp.where(t < ql, q_tok, jnp.where(t < ql + al, a_tok, 0))
    return qa, qlens + alens


def reference_forward(qa_embed, qa_mask, params):
    """Pure-JAX reference of the same forward pass."""
    R, T, N, _ = qa_embed.shape
    H = params["whh0T"].shape[0]

    def step(x, h, c, wT, uT, b):
        gates = x @ wT + h @ uT + b
        i = jax.nn.sigmoid(gates[:, :H]); f = jax.nn.sigmoid(gates[:, H:2 * H])
        g = jnp.tanh(gates[:, 2 * H:3 * H]); o = jax.nn.sigmoid(gates[:, 3 * H:])
        c_n = f * c + i * g
        return o * jnp.tanh(c_n), c_n

    dh = dc = jnp.zeros((N, H), jnp.float32)
    for r in range(R):
        h0 = c0 = h1 = c1 = jnp.zeros((N, H), jnp.float32)
        for t in range(T):
            m = qa_mask[r, t]
            h0n, c0n = step(qa_embed[r, t], h0, c0,
                            params["wih0T"], params["whh0T"], params["b0"])
            h0 = m * h0n + (1 - m) * h0; c0 = m * c0n + (1 - m) * c0
            h1n, c1n = step(h0, h1, c1,
                            params["wih1T"], params["whh1T"], params["b1"])
            h1 = m * h1n + (1 - m) * h1; c1 = m * c1n + (1 - m) * c1
        dh, dc = step(h1, dh, dc, params["wihdT"], params["whhdT"], params["bd"])
    return jnp.stack([h0, dh], 0), jnp.stack([c0, c1], 0)


# ---------------------------------- Main ------------------------------------------

if __name__ == "__main__":
    V, E, H, L = 40, 16, 32, 2        # vocabSize, embedSize, rnnHiddenSize
    R, N, Tq, Ta = 3, 2, 6, 4         # rounds, batch, max ques len, max ans len

    key = jax.random.PRNGKey(0)
    kp, kq, ka, kql, kal = jax.random.split(key, 5)
    params = init_params(kp, V, E, H)

    ques = jax.random.randint(kq, (R, N, Tq), 1, V)
    ans = jax.random.randint(ka, (R, N, Ta), 1, V)
    qlens = jax.random.randint(kql, (R, N), 2, Tq + 1)
    alens = jax.random.randint(kal, (R, N), 1, Ta + 1)
    # left-aligned, right-padded with token 0 (padding_idx)
    ques = jnp.where(jnp.arange(Tq)[None, None, :] < qlens[..., None], ques, 0)
    ans = jnp.where(jnp.arange(Ta)[None, None, :] < alens[..., None], ans, 0)

    qa_tok, qa_lens = concat_padded_sequences(ques, qlens, ans, alens)
    qa_tok = qa_tok.astype(jnp.int32)       # (R, N, T)
    qa_lens = qa_lens.astype(jnp.int32)     # (R, N)
    T = qa_tok.shape[-1]

    H_link, C_link = jax.block_until_ready(
        qa_encoder_forward(qa_tok, qa_lens, params))

    # Pure-JAX reference on the same data.
    qa_embed = jnp.take(params["emb"], qa_tok, axis=0)                   # (R,N,T,E)
    qa_embed = jnp.transpose(qa_embed, (0, 2, 1, 3)).astype(jnp.float32) # (R,T,N,E)
    qa_mask = (jnp.arange(T)[None, :, None] < qa_lens[:, None, :]
               ).astype(jnp.float32)[..., None]                          # (R,T,N,1)
    H_ref, C_ref = reference_forward(qa_embed, qa_mask, params)

    assert H_link.shape == (L, N, H) and C_link.shape == (L, N, H)
    assert jnp.allclose(H_link, H_ref, atol=2e-4, rtol=2e-4)
    assert jnp.allclose(C_link, C_ref, atol=2e-4, rtol=2e-4)
    print("KERNEL_OK")
</pallas_src>

<mosaic_0001>
module attributes {stable_mosaic.version = 11 : i64} {
  func.func @fact_lstm_kernel(%arg0: i32, %arg1: memref<1xi32, #tpu.memory_space<smem>>, %arg2: memref<1x240x16xf32, #tpu.memory_space<vmem>>, %arg3: memref<24x1xi32, #tpu.memory_space<vmem>>, %arg4: memref<16x512xf32, #tpu.memory_space<vmem>>, %arg5: memref<128x512xf32, #tpu.memory_space<vmem>>, %arg6: memref<1x512xf32, #tpu.memory_space<vmem>>, %arg7: memref<128x512xf32, #tpu.memory_space<vmem>>, %arg8: memref<128x512xf32, #tpu.memory_space<vmem>>, %arg9: memref<1x512xf32, #tpu.memory_space<vmem>>, %arg10: memref<24x128xf32, #tpu.memory_space<vmem>>, %arg11: memref<24x128xf32, #tpu.memory_space<vmem>>, %arg12: memref<24x128xf32, #tpu.memory_space<vmem>>, %arg13: memref<24x128xf32, #tpu.memory_space<vmem>>, %arg14: memref<240x512xf32, #tpu.memory_space<vmem>>) attributes {dimension_semantics = [#tpu.dimension_semantics<parallel>], iteration_bounds = array<i64: 1>, scalar_prefetch = 1 : i64, scratch_operands = 1 : i64, tpu.core_type = #tpu.core_type<tc>, window_params = [{transform_indices = @transform_0, window_bounds = array<i64: 1, 240, 16>}, {transform_indices = @transform_1, window_bounds = array<i64: 24, 1>}, {pipeline_mode = #tpu.pipeline_mode<synchronous>, transform_indices = @transform_2, window_bounds = array<i64: 16, 512>}, {pipeline_mode = #tpu.pipeline_mode<synchronous>, transform_indices = @transform_3, window_bounds = array<i64: 128, 512>}, {pipeline_mode = #tpu.pipeline_mode<synchronous>, transform_indices = @transform_4, window_bounds = array<i64: 1, 512>}, {pipeline_mode = #tpu.pipeline_mode<synchronous>, transform_indices = @transform_5, window_bounds = array<i64: 128, 512>}, {pipeline_mode = #tpu.pipeline_mode<synchronous>, transform_indices = @transform_6, window_bounds = array<i64: 128, 512>}, {pipeline_mode = #tpu.pipeline_mode<synchronous>, transform_indices = @transform_7, window_bounds = array<i64: 1, 512>}, {transform_indices = @transform_8, window_bounds = array<i64: 24, 128>}, {transform_indices = @transform_9, window_bounds = array<i64: 24, 128>}, {transform_indices = @transform_10, window_bounds = array<i64: 24, 128>}, {transform_indices = @transform_11, window_bounds = array<i64: 24, 128>}]} {
    %c0 = arith.constant 0 : index
    %c0_0 = arith.constant 0 : index
    %c0_1 = arith.constant 0 : index
    %0 = vector.load %arg2[%c0, %c0_0, %c0_1] : memref<1x240x16xf32, #tpu.memory_space<vmem>>, vector<1x240x16xf32>
    %1 = vector.shape_cast %0 : vector<1x240x16xf32> to vector<240x16xf32>
    %c0_2 = arith.constant 0 : index
    %c0_3 = arith.constant 0 : index
    %2 = vector.load %arg4[%c0_2, %c0_3] : memref<16x512xf32, #tpu.memory_space<vmem>>, vector<16x512xf32>
    %cst = arith.constant dense<0.000000e+00> : vector<240x512xf32>
    %3 = tpu.matmul %1, %2, %cst {dimension_numbers = #tpu.dot_dimension_numbers<[1], [0], [0], [1], [0, 0, 1, 1], [], []>} : vector<240x16xf32>, vector<16x512xf32>, vector<240x512xf32> -> vector<240x512xf32>
    %c0_4 = arith.constant 0 : index
    %c0_5 = arith.constant 0 : index
    %4 = vector.load %arg6[%c0_4, %c0_5] : memref<1x512xf32, #tpu.memory_space<vmem>>, vector<1x512xf32>
    %5 = vector.broadcast %4 : vector<1x512xf32> to vector<240x512xf32>
    %6 = arith.addf %3, %5 : vector<240x512xf32>
    %c0_6 = arith.constant 0 : index
    %c0_7 = arith.constant 0 : index
    %7 = vector.load %arg14[%c0_6, %c0_7] : memref<240x512xf32, #tpu.memory_space<vmem>>, vector<240x512xf32>
    tpu.vector_store %arg14[%c0_6, %c0_7], %6 {strides = array<i32>} : memref<240x512xf32, #tpu.memory_space<vmem>>, vector<240x512xf32>,
    %c0_8 = arith.constant 0 : index
    %c0_9 = arith.constant 0 : index
    %8 = vector.load %arg3[%c0_8, %c0_9] : memref<24x1xi32, #tpu.memory_space<vmem>>, vector<24x1xi32>
    %c0_10 = arith.constant 0 : index
    %c0_11 = arith.constant 0 : index
    %9 = vector.load %arg9[%c0_10, %c0_11] : memref<1x512xf32, #tpu.memory_space<vmem>>, vector<1x512xf32>
    %10 = vector.shape_cast %9 : vector<1x512xf32> to vector<1x512xf32>
    %11 = vector.broadcast %10 : vector<1x512xf32> to vector<24x512xf32>
    %cst_12 = arith.constant 0.000000e+00 : f32
    %12 = vector.broadcast %cst_12 : f32 to vector<24x128xf32>
    %13 = arith.index_cast %arg0 : i32 to index
    %14 = memref.load %arg1[%13] : memref<1xi32, #tpu.memory_space<smem>>
    %c0_i32 = arith.constant 0 : i32
    %15 = arith.subi %14, %c0_i32 : i32
    %16 = arith.addi %c0_i32, %15 : i32
    %c1_i32 = arith.constant 1 : i32
    %17:4 = scf.for %arg15 = %c0_i32 to %16 step %c1_i32 iter_args(%arg16 = %12, %arg17 = %12, %arg18 = %12, %arg19 = %12) -> (vector<24x128xf32>, vector<24x128xf32>, vector<24x128xf32>, vector<24x128xf32>)  : i32 {
      %22 = vector.broadcast %arg15 : i32 to vector<24x1xi32>
      %23 = arith.cmpi slt, %22, %8 : vector<24x1xi32>
      %24 = vector.shape_cast %23 : vector<24x1xi1> to vector<24x1xi1>
      %25 = vector.broadcast %24 : vector<24x1xi1> to vector<24x128xi1>
      %c24_i32 = arith.constant 24 : i32
      %26 = arith.muli %arg15, %c24_i32 : i32
      %27 = tpu.assume_multiple %26, 8 : i32
      %28 = arith.index_cast %27 : i32 to index
      %c0_21 = arith.constant 0 : index
      %29 = vector.load %arg14[%28, %c0_21] : memref<240x512xf32, #tpu.memory_space<vmem>>, vector<24x512xf32>
      %c0_22 = arith.constant 0 : index
      %c0_23 = arith.constant 0 : index
      %30 = vector.load %arg5[%c0_22, %c0_23] : memref<128x512xf32, #tpu.memory_space<vmem>>, vector<128x512xf32>
      %cst_24 = arith.constant dense<0.000000e+00> : vector<24x512xf32>
      %31 = tpu.matmul %arg16, %30, %cst_24 {dimension_numbers = #tpu.dot_dimension_numbers<[1], [0], [0], [1], [0, 0, 1, 1], [], []>} : vector<24x128xf32>, vector<128x512xf32>, vector<24x512xf32> -> vector<24x512xf32>
      %32 = arith.addf %29, %31 : vector<24x512xf32>
      %33 = vector.extract_strided_slice %32 {offsets = [0, 0], sizes = [24, 128], strides = [1, 1]} : vector<24x512xf32> to vector<24x128xf32>
      %34 = arith.negf %33 : vector<24x128xf32>
      %35 = math.exp %34 : vector<24x128xf32>
      %cst_25 = arith.constant 1.000000e+00 : f32
      %36 = vector.broadcast %cst_25 : f32 to vector<24x128xf32>
      %37 = arith.addf %36, %35 : vector<24x128xf32>
      %38 = arith.divf %36, %37 : vector<24x128xf32>
      %39 = vector.extract_strided_slice %32 {offsets = [0, 128], sizes = [24, 128], strides = [1, 1]} : vector<24x512xf32> to vector<24x128xf32>
      %40 = arith.negf %39 : vector<24x128xf32>
      %41 = math.exp %40 : vector<24x128xf32>
      %cst_26 = arith.constant 1.000000e+00 : f32
      %42 = vector.broadcast %cst_26 : f32 to vector<24x128xf32>
      %43 = arith.addf %42, %41 : vector<24x128xf32>
      %44 = arith.divf %42, %43 : vector<24x128xf32>
      %45 = vector.extract_strided_slice %32 {offsets = [0, 256], sizes = [24, 128], strides = [1, 1]} : vector<24x512xf32> to vector<24x128xf32>
      %46 = math.tanh %45 : vector<24x128xf32>
      %47 = vector.extract_strided_slice %32 {offsets = [0, 384], sizes = [24, 128], strides = [1, 1]} : vector<24x512xf32> to vector<24x128xf32>
      %48 = arith.negf %47 : vector<24x128xf32>
      %49 = math.exp %48 : vector<24x128xf32>
      %cst_27 = arith.constant 1.000000e+00 : f32
      %50 = vector.broadcast %cst_27 : f32 to vector<24x128xf32>
      %51 = arith.addf %50, %49 : vector<24x128xf32>
      %52 = arith.divf %50, %51 : vector<24x128xf32>
      %53 = arith.mulf %44, %arg17 : vector<24x128xf32>
      %54 = arith.mulf %38, %46 : vector<24x128xf32>
      %55 = arith.addf %53, %54 : vector<24x128xf32>
      %56 = math.tanh %55 : vector<24x128xf32>
      %57 = arith.mulf %52, %56 : vector<24x128xf32>
      %58 = arith.select %25, %57, %arg16 : vector<24x128xi1>, vector<24x128xf32>
      %59 = arith.select %25, %55, %arg17 : vector<24x128xi1>, vector<24x128xf32>
      %c0_28 = arith.constant 0 : index
      %c0_29 = arith.constant 0 : index
      %60 = vector.load %arg7[%c0_28, %c0_29] : memref<128x512xf32, #tpu.memory_space<vmem>>, vector<128x512xf32>
      %cst_30 = arith.constant dense<0.000000e+00> : vector<24x512xf32>
      %61 = tpu.matmul %58, %60, %cst_30 {dimension_numbers = #tpu.dot_dimension_numbers<[1], [0], [0], [1], [0, 0, 1, 1], [], []>} : vector<24x128xf32>, vector<128x512xf32>, vector<24x512xf32> -> vector<24x512xf32>
      %c0_31 = arith.constant 0 : index
      %c0_32 = arith.constant 0 : index
      %62 = vector.load %arg8[%c0_31, %c0_32] : memref<128x512xf32, #tpu.memory_space<vmem>>, vector<128x512xf32>
      %cst_33 = arith.constant dense<0.000000e+00> : vector<24x512xf32>
      %63 = tpu.matmul %arg18, %62, %cst_33 {dimension_numbers = #tpu.dot_dimension_numbers<[1], [0], [0], [1], [0, 0, 1, 1], [], []>} : vector<24x128xf32>, vector<128x512xf32>, vector<24x512xf32> -> vector<24x512xf32>
      %64 = arith.addf %61, %63 : vector<24x512xf32>
      %65 = arith.addf %64, %11 : vector<24x512xf32>
      %66 = vector.extract_strided_slice %65 {offsets = [0, 0], sizes = [24, 128], strides = [1, 1]} : vector<24x512xf32> to vector<24x128xf32>
      %67 = arith.negf %66 : vector<24x128xf32>
      %68 = math.exp %67 : vector<24x128xf32>
      %cst_34 = arith.constant 1.000000e+00 : f32
      %69 = vector.broadcast %cst_34 : f32 to vector<24x128xf32>
      %70 = arith.addf %69, %68 : vector<24x128xf32>
      %71 = arith.divf %69, %70 : vector<24x128xf32>
      %72 = vector.extract_strided_slice %65 {offsets = [0, 128], sizes = [24, 128], strides = [1, 1]} : vector<24x512xf32> to vector<24x128xf32>
      %73 = arith.negf %72 : vector<24x128xf32>
      %74 = math.exp %73 : vector<24x128xf32>
      %cst_35 = arith.constant 1.000000e+00 : f32
      %75 = vector.broadcast %cst_35 : f32 to vector<24x128xf32>
      %76 = arith.addf %75, %74 : vector<24x128xf32>
      %77 = arith.divf %75, %76 : vector<24x128xf32>
      %78 = vector.extract_strided_slice %65 {offsets = [0, 256], sizes = [24, 128], strides = [1, 1]} : vector<24x512xf32> to vector<24x128xf32>
      %79 = math.tanh %78 : vector<24x128xf32>
      %80 = vector.extract_strided_slice %65 {offsets = [0, 384], sizes = [24, 128], strides = [1, 1]} : vector<24x512xf32> to vector<24x128xf32>
      %81 = arith.negf %80 : vector<24x128xf32>
      %82 = math.exp %81 : vector<24x128xf32>
      %cst_36 = arith.constant 1.000000e+00 : f32
      %83 = vector.broadcast %cst_36 : f32 to vector<24x128xf32>
      %84 = arith.addf %83, %82 : vector<24x128xf32>
      %85 = arith.divf %83, %84 : vector<24x128xf32>
      %86 = arith.mulf %77, %arg19 : vector<24x128xf32>
      %87 = arith.mulf %71, %79 : vector<24x128xf32>
      %88 = arith.addf %86, %87 : vector<24x128xf32>
      %89 = math.tanh %88 : vector<24x128xf32>
      %90 = arith.mulf %85, %89 : vector<24x128xf32>
      %91 = arith.select %25, %90, %arg18 : vector<24x128xi1>, vector<24x128xf32>
      %92 = arith.select %25, %88, %arg19 : vector<24x128xi1>, vector<24x128xf32>
      scf.yield %58, %59, %91, %92 : vector<24x128xf32>, vector<24x128xf32>, vector<24x128xf32>, vector<24x128xf32>
    }
    %c0_13 = arith.constant 0 : index
    %c0_14 = arith.constant 0 : index
    %18 = vector.load %arg10[%c0_13, %c0_14] : memref<24x128xf32, #tpu.memory_space<vmem>>, vector<24x128xf32>
    tpu.vector_store %arg10[%c0_13, %c0_14], %17#0 {strides = array<i32>} : memref<24x128xf32, #tpu.memory_space<vmem>>, vector<24x128xf32>,
    %c0_15 = arith.constant 0 : index
    %c0_16 = arith.constant 0 : index
    %19 = vector.load %arg11[%c0_15, %c0_16] : memref<24x128xf32, #tpu.memory_space<vmem>>, vector<24x128xf32>
    tpu.vector_store %arg11[%c0_15, %c0_16], %17#1 {strides = array<i32>} : memref<24x128xf32, #tpu.memory_space<vmem>>, vector<24x128xf32>,
    %c0_17 = arith.constant 0 : index
    %c0_18 = arith.constant 0 : index
    %20 = vector.load %arg12[%c0_17, %c0_18] : memref<24x128xf32, #tpu.memory_space<vmem>>, vector<24x128xf32>
    tpu.vector_store %arg12[%c0_17, %c0_18], %17#2 {strides = array<i32>} : memref<24x128xf32, #tpu.memory_space<vmem>>, vector<24x128xf32>,
    %c0_19 = arith.constant 0 : index
    %c0_20 = arith.constant 0 : index
    %21 = vector.load %arg13[%c0_19, %c0_20] : memref<24x128xf32, #tpu.memory_space<vmem>>, vector<24x128xf32>
    tpu.vector_store %arg13[%c0_19, %c0_20], %17#3 {strides = array<i32>} : memref<24x128xf32, #tpu.memory_space<vmem>>, vector<24x128xf32>,
    return
  }
  func.func @transform_0(%arg0: i32, %arg1: memref<1xi32, #tpu.memory_space<smem>>) -> (i32, i32, i32) {
    %c0_i32 = arith.constant 0 : i32
    %c0_i32_0 = arith.constant 0 : i32
    %c0_i32_1 = arith.constant 0 : i32
    return %arg0, %c0_i32, %c0_i32_0 : i32, i32, i32
  }
  func.func @transform_1(%arg0: i32, %arg1: memref<1xi32, #tpu.memory_space<smem>>) -> (i32, i32) {
    %c0_i32 = arith.constant 0 : i32
    %c0_i32_0 = arith.constant 0 : i32
    return %arg0, %c0_i32 : i32, i32
  }
  func.func @transform_2(%arg0: i32, %arg1: memref<1xi32, #tpu.memory_space<smem>>) -> (i32, i32) {
    %c0_i32 = arith.constant 0 : i32
    %c0_i32_0 = arith.constant 0 : i32
    %c0_i32_1 = arith.constant 0 : i32
    return %c0_i32, %c0_i32_0 : i32, i32
  }
  func.func @transform_3(%arg0: i32, %arg1: memref<1xi32, #tpu.memory_space<smem>>) -> (i32, i32) {
    %c0_i32 = arith.constant 0 : i32
    %c0_i32_0 = arith.constant 0 : i32
    %c0_i32_1 = arith.constant 0 : i32
    return %c0_i32, %c0_i32_0 : i32, i32
  }
  func.func @transform_4(%arg0: i32, %arg1: memref<1xi32, #tpu.memory_space<smem>>) -> (i32, i32) {
    %c0_i32 = arith.constant 0 : i32
    %c0_i32_0 = arith.constant 0 : i32
    %c0_i32_1 = arith.constant 0 : i32
    return %c0_i32, %c0_i32_0 : i32, i32
  }
  func.func @transform_5(%arg0: i32, %arg1: memref<1xi32, #tpu.memory_space<smem>>) -> (i32, i32) {
    %c0_i32 = arith.constant 0 : i32
    %c0_i32_0 = arith.constant 0 : i32
    %c0_i32_1 = arith.constant 0 : i32
    return %c0_i32, %c0_i32_0 : i32, i32
  }
  func.func @transform_6(%arg0: i32, %arg1: memref<1xi32, #tpu.memory_space<smem>>) -> (i32, i32) {
    %c0_i32 = arith.constant 0 : i32
    %c0_i32_0 = arith.constant 0 : i32
    %c0_i32_1 = arith.constant 0 : i32
    return %c0_i32, %c0_i32_0 : i32, i32
  }
  func.func @transform_7(%arg0: i32, %arg1: memref<1xi32, #tpu.memory_space<smem>>) -> (i32, i32) {
    %c0_i32 = arith.constant 0 : i32
    %c0_i32_0 = arith.constant 0 : i32
    %c0_i32_1 = arith.constant 0 : i32
    return %c0_i32, %c0_i32_0 : i32, i32
  }
  func.func @transform_8(%arg0: i32, %arg1: memref<1xi32, #tpu.memory_space<smem>>) -> (i32, i32) {
    %c0_i32 = arith.constant 0 : i32
    %c0_i32_0 = arith.constant 0 : i32
    return %arg0, %c0_i32 : i32, i32
  }
  func.func @transform_9(%arg0: i32, %arg1: memref<1xi32, #tpu.memory_space<smem>>) -> (i32, i32) {
    %c0_i32 = arith.constant 0 : i32
    %c0_i32_0 = arith.constant 0 : i32
    return %arg0, %c0_i32 : i32, i32
  }
  func.func @transform_10(%arg0: i32, %arg1: memref<1xi32, #tpu.memory_space<smem>>) -> (i32, i32) {
    %c0_i32 = arith.constant 0 : i32
    %c0_i32_0 = arith.constant 0 : i32
    return %arg0, %c0_i32 : i32, i32
  }
  func.func @transform_11(%arg0: i32, %arg1: memref<1xi32, #tpu.memory_space<smem>>) -> (i32, i32) {
    %c0_i32 = arith.constant 0 : i32
    %c0_i32_0 = arith.constant 0 : i32
    return %arg0, %c0_i32 : i32, i32
  }
}

</mosaic_0001>

<llo_original>
// kernel: tpu_custom_call.1
$region0: #{tpu_custom_call.1}
  #allocation0 [shape = 'u32[]', space=smem, size = 0x4, offset = 0x4, fixed_abs, tag = 'smem constant byte address 0x4 - core index']
  #allocation1 [shape = 'u32[144,128]{1,0:T(1,128)}', space=vmem, size = 0x12000, scoped, tag = 'internal scratch']
  #allocation2 [shape = 'f32[240,512]{1,0:T(8,128)}', space=vmem, size = 0x78000, scoped, tag = 'scratch operand']
  #allocation3 [shape = 's32[1]{0}', space=sflag, size = 0x4, scoped, tag = 'scoped memory for tpu_custom_call.1']
  #allocation4 [shape = 's32[1]{0:T(128)S(6)}', space=smem, size = 0x200, scoped, tag = 'prefetched SMEM operand 0']
  %s0 = inlined_call_operand.<no memory space> [shape: s32[1], index: 0, kind: input, shape index: {}]
  %s1 = inlined_call_operand.vmem [shape: f32[1,240,16], index: 1, kind: input, shape index: {}]
  %s2 = inlined_call_operand.vmem [shape: s32[24,1], index: 2, kind: input, shape index: {}]
  %s3 = inlined_call_operand.vmem [shape: f32[16,512], index: 3, kind: input, shape index: {}]
  %s4 = inlined_call_operand.hbm [shape: f32[128,512], index: 4, kind: input, shape index: {}]
  %s5 = inlined_call_operand.vmem [shape: f32[1,512], index: 5, kind: input, shape index: {}]
  %s6 = inlined_call_operand.hbm [shape: f32[128,512], index: 6, kind: input, shape index: {}]
  %s7 = inlined_call_operand.hbm [shape: f32[128,512], index: 7, kind: input, shape index: {}]
  %s8 = inlined_call_operand.vmem [shape: f32[1,512], index: 8, kind: input, shape index: {}]
  %s9 = inlined_call_operand.hbm [shape: f32[24,128], index: 9, kind: output, shape index: {0}]
  %s10 = inlined_call_operand.hbm [shape: f32[24,128], index: 10, kind: output, shape index: {1}]
  %s11 = inlined_call_operand.hbm [shape: f32[24,128], index: 11, kind: output, shape index: {2}]
  %s12 = inlined_call_operand.hbm [shape: f32[24,128], index: 12, kind: output, shape index: {3}]
  %13 = xla_tuple %s9, %s10, %s11, %s12
  %s14 = sld [smem:[#allocation0]]
  $region85: #{tpu_custom_call.1} parent=0
    _
  %s16 = ssub.s32 1, %s14
  %s17 = scalar_select 0, %s16, %s14
  %18 = sst [smem:[#allocation4]] %s0
  $region1: #{tpu_custom_call.1} parent=0
    #allocation5 [shape = 'u8[262144]{0}', space=vmem, size = 0x40000, scoped, tag = 'input window, operand 4, single buffered']
    #allocation6 [shape = 's32[1]{0}', space=sflag, size = 0x4, scoped, tag = 'scoped memory for tpu_custom_call.1']
    #allocation7 [shape = 's32[1]{0}', space=sflag, size = 0x4, scoped, tag = 'scoped memory for tpu_custom_call.1']
    #allocation8 [shape = 'u8[262144]{0}', space=vmem, size = 0x40000, scoped, tag = 'input window, operand 6, single buffered']
    #allocation9 [shape = 's32[1]{0}', space=sflag, size = 0x4, scoped, tag = 'scoped memory for tpu_custom_call.1']
    #allocation10 [shape = 'u8[262144]{0}', space=vmem, size = 0x40000, scoped, tag = 'input window, operand 7, single buffered']
    #allocation11 [shape = 'u8[12288]{0}', space=vmem, size = 0x3000, scoped, tag = 'output window, operand 0, single buffered']
    #allocation12 [shape = 'u8[12288]{0}', space=vmem, size = 0x3000, scoped, tag = 'output window, operand 1, single buffered']
    #allocation13 [shape = 's32[1]{0}', space=sflag, size = 0x4, scoped, tag = 'scoped memory for tpu_custom_call.1']
    #allocation14 [shape = 'u8[12288]{0}', space=vmem, size = 0x3000, scoped, tag = 'output window, operand 2, single buffered']
    #allocation15 [shape = 'u8[12288]{0}', space=vmem, size = 0x3000, scoped, tag = 'output window, operand 3, single buffered']
    #allocation16 [shape = 's32[1]{0}', space=sflag, size = 0x4, scoped, tag = 'scoped memory for tpu_custom_call.1']
    %19 = vsyncpa [#allocation6], 0
    %20 = vsyncpa [#allocation9], 0
    %21 = vsyncpa [#allocation7], 0
    %22 = vsyncpa [#allocation13], 0
    %23 = vsyncpa [#allocation16], 0
    // Predicated region
    $region2: #{tpu_custom_call.1} parent=1 // pred_check
      _
    $region3: #{tpu_custom_call.1} parent=1 // pred_check_branch
      %25 = sbr.rel (0) target = $region5
    $region4: #{tpu_custom_call.1} parent=1 // pred_region
      _
    $region5: #{tpu_custom_call.1} parent=1 // pred_fallthru
      _
    // Predicated region
    $region6: #{tpu_custom_call.1} parent=1 // pred_check
      _
    $region7: #{tpu_custom_call.1} parent=1 // pred_check_branch
      %27 = sbr.rel (0) target = $region9
    $region8: #{tpu_custom_call.1} parent=1 // pred_region
      _
    $region9: #{tpu_custom_call.1} parent=1 // pred_fallthru
      _
    // Predicated region
    $region10: #{tpu_custom_call.1} parent=1 // pred_check
      _
    $region11: #{tpu_custom_call.1} parent=1 // pred_check_branch
      %29 = sbr.rel (0) target = $region13
    $region12: #{tpu_custom_call.1} parent=1 // pred_region
      _
    $region13: #{tpu_custom_call.1} parent=1 // pred_fallthru
      _
    // Predicated region
    $region14: #{tpu_custom_call.1} parent=1 // pred_check
      _
    $region15: #{tpu_custom_call.1} parent=1 // pred_check_branch
      %31 = sbr.rel (0) target = $region17
    $region16: #{tpu_custom_call.1} parent=1 // pred_region
      %s33 = ssub.s32 8192, 8192
      %34 = vsyncadd [#allocation6], %s33
      %s35 = sshll.u32 [#allocation5], 4
      %s36 = int_to_ptr.vmem [resolvable:$true] %s35
      %41 = dma.hbm_to_vmem [thread:$0]  %s4, 8192, %s36, [#allocation6], 512, 512, 32
    $region17: #{tpu_custom_call.1} parent=1 // pred_fallthru
      _
    // Predicated region
    $region18: #{tpu_custom_call.1} parent=1 // pred_check
      _
    $region19: #{tpu_custom_call.1} parent=1 // pred_check_branch
      %43 = sbr.rel (0) target = $region21
    $region20: #{tpu_custom_call.1} parent=1 // pred_region
      _
    $region21: #{tpu_custom_call.1} parent=1 // pred_fallthru
      _
    // Predicated region
    $region22: #{tpu_custom_call.1} parent=1 // pred_check
      _
    $region23: #{tpu_custom_call.1} parent=1 // pred_check_branch
      %45 = sbr.rel (0) target = $region25
    $region24: #{tpu_custom_call.1} parent=1 // pred_region
      %s47 = ssub.s32 8192, 8192
      %48 = vsyncadd [#allocation9], %s47
      %s49 = sshll.u32 [#allocation8], 4
      %s50 = int_to_ptr.vmem [resolvable:$true] %s49
      %55 = dma.hbm_to_vmem [thread:$0]  %s6, 8192, %s50, [#allocation9], 512, 512, 32
    $region25: #{tpu_custom_call.1} parent=1 // pred_fallthru
      _
    // Predicated region
    $region26: #{tpu_custom_call.1} parent=1 // pred_check
      _
    $region27: #{tpu_custom_call.1} parent=1 // pred_check_branch
      %57 = sbr.rel (0) target = $region29
    $region28: #{tpu_custom_call.1} parent=1 // pred_region
      %s59 = ssub.s32 8192, 8192
      %60 = vsyncadd [#allocation9], %s59
      %s61 = sshll.u32 [#allocation10], 4
      %s62 = int_to_ptr.vmem [resolvable:$true] %s61
      %67 = dma.hbm_to_vmem [thread:$0]  %s7, 8192, %s62, [#allocation9], 512, 512, 32
    $region29: #{tpu_custom_call.1} parent=1 // pred_fallthru
      _
    // Predicated region
    $region30: #{tpu_custom_call.1} parent=1 // pred_check
      _
    $region31: #{tpu_custom_call.1} parent=1 // pred_check_branch
      %69 = sbr.rel (0) target = $region33
    $region32: #{tpu_custom_call.1} parent=1 // pred_region
      _
    $region33: #{tpu_custom_call.1} parent=1 // pred_fallthru
      _
    // Predicated region
    $region34: #{tpu_custom_call.1} parent=1 // pred_check
      _
    $region35: #{tpu_custom_call.1} parent=1 // pred_check_branch
      %71 = sbr.rel (0) target = $region37
    $region36: #{tpu_custom_call.1} parent=1 // pred_region
      %72 = dma.done [#allocation6], 8192
    $region37: #{tpu_custom_call.1} parent=1 // pred_fallthru
      _
    // Predicated region
    $region38: #{tpu_custom_call.1} parent=1 // pred_check
      _
    $region39: #{tpu_custom_call.1} parent=1 // pred_check_branch
      %74 = sbr.rel (0) target = $region41
    $region40: #{tpu_custom_call.1} parent=1 // pred_region
      %75 = dma.done [#allocation9], 8192
    $region41: #{tpu_custom_call.1} parent=1 // pred_fallthru
      _
    // Predicated region
    $region42: #{tpu_custom_call.1} parent=1 // pred_check
      _
    $region43: #{tpu_custom_call.1} parent=1 // pred_check_branch
      %77 = sbr.rel (0) target = $region45
    $region44: #{tpu_custom_call.1} parent=1 // pred_region
      %78 = dma.done [#allocation9], 8192
    $region45: #{tpu_custom_call.1} parent=1 // pred_fallthru
      _
    %v79 = vld [vmem:[%s1] sm:$0xff]
    %v80 = vld [vmem:[%s1 + $0x8] sm:$0xff]
    %v81 = vld [vmem:[%s1 + $0x10] sm:$0xff]
    %v82 = vld [vmem:[%s1 + $0x18] sm:$0xff]
    %v83 = vld [vmem:[%s1 + $0x20] sm:$0xff]
    %v84 = vld [vmem:[%s1 + $0x28] sm:$0xff]
    %v85 = vld [vmem:[%s1 + $0x30] sm:$0xff]
    %v86 = vld [vmem:[%s1 + $0x38] sm:$0xff]
    %v87 = vld [vmem:[%s1 + $0x40] sm:$0xff]
    %v88 = vld [vmem:[%s1 + $0x48] sm:$0xff]
    %v89 = vld [vmem:[%s1 + $0x50] sm:$0xff]
    %v90 = vld [vmem:[%s1 + $0x58] sm:$0xff]
    %v91 = vld [vmem:[%s1 + $0x60] sm:$0xff]
    %v92 = vld [vmem:[%s1 + $0x68] sm:$0xff]
    %v93 = vld [vmem:[%s1 + $0x70] sm:$0xff]
    %v94 = vld [vmem:[%s1 + $0x78] sm:$0xff]
    %v95 = vld [vmem:[%s1 + $0x80] sm:$0xff]
    %v96 = vld [vmem:[%s1 + $0x88] sm:$0xff]
    %v97 = vld [vmem:[%s1 + $0x90] sm:$0xff]
    %v98 = vld [vmem:[%s1 + $0x98] sm:$0xff]
    %v99 = vld [vmem:[%s1 + $0xa0] sm:$0xff]
    %v100 = vld [vmem:[%s1 + $0xa8] sm:$0xff]
    %v101 = vld [vmem:[%s1 + $0xb0] sm:$0xff]
    %v102 = vld [vmem:[%s1 + $0xb8] sm:$0xff]
    %v103 = vld [vmem:[%s1 + $0xc0] sm:$0xff]
    %v104 = vld [vmem:[%s1 + $0xc8] sm:$0xff]
    %v105 = vld [vmem:[%s1 + $0xd0] sm:$0xff]
    %v106 = vld [vmem:[%s1 + $0xd8] sm:$0xff]
    %v107 = vld [vmem:[%s1 + $0xe0] sm:$0xff]
    %v108 = vld [vmem:[%s1 + $0xe8] sm:$0xff]
    %v109 = vld [vmem:[%s3] sm:$0xff]
    %v110 = vld [vmem:[%s3 + $0x8] sm:$0xff]
    %v111 = vld [vmem:[%s3 + $0x10] sm:$0xff]
    %v112 = vld [vmem:[%s3 + $0x18] sm:$0xff]
    %v113 = vld [vmem:[%s3 + $0x20] sm:$0xff]
    %v114 = vld [vmem:[%s3 + $0x28] sm:$0xff]
    %v115 = vld [vmem:[%s3 + $0x30] sm:$0xff]
    %v116 = vld [vmem:[%s3 + $0x38] sm:$0xff]
    %v117 = vld [vmem:[%s5] sm:$0xf]
    %v119 = vlaneseq
    %v120 = vshrl.u32 %v119, 7
    %v121 = vsub.s32 0, %v120
    %v122 = vrot.slane %v117, %v121
    %v123 = vlaneseq
    %v124 = vshrl.u32 %v123, 7
    %v125 = vsub.s32 1, %v124
    %v126 = vrot.slane %v117, %v125
    %v127 = vlaneseq
    %v128 = vshrl.u32 %v127, 7
    %v129 = vsub.s32 2, %v128
    %v130 = vrot.slane %v117, %v129
    %v131 = vlaneseq
    %v132 = vshrl.u32 %v131, 7
    %v133 = vsub.s32 3, %v132
    %v134 = vrot.slane %v117, %v133
    %vm139 = vcmask 130048
    %v141 = vsel %vm139, %v79, 0
    %v144 = vsel %vm139, %v80, 0
    %v147 = vsel %vm139, %v81, 0
    %v150 = vsel %vm139, %v82, 0
    %v153 = vsel %vm139, %v83, 0
    %v156 = vsel %vm139, %v84, 0
    %v159 = vsel %vm139, %v85, 0
    %v162 = vsel %vm139, %v86, 0
    %v165 = vsel %vm139, %v87, 0
    %v168 = vsel %vm139, %v88, 0
    %v171 = vsel %vm139, %v89, 0
    %v174 = vsel %vm139, %v90, 0
    %v177 = vsel %vm139, %v91, 0
    %v180 = vsel %vm139, %v92, 0
    %v183 = vsel %vm139, %v93, 0
    %v186 = vsel %vm139, %v94, 0
    %v189 = vsel %vm139, %v95, 0
    %v192 = vsel %vm139, %v96, 0
    %v195 = vsel %vm139, %v97, 0
    %v198 = vsel %vm139, %v98, 0
    %v201 = vsel %vm139, %v99, 0
    %v204 = vsel %vm139, %v100, 0
    %v207 = vsel %vm139, %v101, 0
    %v210 = vsel %vm139, %v102, 0
    %v213 = vsel %vm139, %v103, 0
    %v216 = vsel %vm139, %v104, 0
    %v219 = vsel %vm139, %v105, 0
    %v222 = vsel %vm139, %v106, 0
    %v225 = vsel %vm139, %v107, 0
    %v228 = vsel %vm139, %v108, 0
    %230 = vmatprep.subr.mxu0 0.0
    %231 = vmatpush1.msra.mxu0 0.0
    %232 = vmatprep.subr.mxu0 0.0
    %233 = vmatpush1.msra.mxu0 0.0
    %234 = vmatprep.subr.mxu0 0.0
    %235 = vmatpush1.msra.mxu0 0.0
    %236 = vmatprep.subr.mxu0 0.0
    %237 = vmatpush1.msra.mxu0 0.0
    %238 = vmatprep.subr.mxu0 0.0
    %239 = vmatpush1.msra.mxu0 0.0
    %240 = vmatprep.subr.mxu0 0.0
    %241 = vmatpush1.msra.mxu0 0.0
    %242 = vmatprep.subr.mxu0 0.0
    %243 = vmatpush1.msra.mxu0 0.0
    %244 = vmatprep.subr.mxu0 0.0
    %245 = vmatpush1.msra.mxu0 0.0
    %246 = vmatprep.subr.mxu0 0.0
    %247 = vmatpush1.msra.mxu0 0.0
    %248 = vmatprep.subr.mxu0 0.0
    %249 = vmatpush1.msra.mxu0 0.0
    %250 = vmatprep.subr.mxu0 0.0
    %251 = vmatpush1.msra.mxu0 0.0
    %252 = vmatprep.subr.mxu0 0.0
    %253 = vmatpush1.msra.mxu0 0.0
    %254 = vmatprep.subr.mxu0 0.0
    %255 = vmatpush1.msra.mxu0 0.0
    %256 = vmatprep.subr.mxu0 0.0
    %257 = vmatpush1.msra.mxu0 0.0
    %258 = vmatprep.subr.mxu0 %v114
    %259 = vmatpush1.msra.mxu0 %v113
    %260 = vmatprep.subr.mxu0 %v110
    %261 = vmatpush1.msra.mxu0 %v109
    %262 = vmatprep.subr.mxu0 0.0
    %263 = vmatpush2.msra.mxu0 0.0
    %264 = vmatprep.subr.mxu0 0.0
    %265 = vmatpush2.msra.mxu0 0.0
    %266 = vmatprep.subr.mxu0 0.0
    %267 = vmatpush2.msra.mxu0 0.0
    %268 = vmatprep.subr.mxu0 0.0
    %269 = vmatpush2.msra.mxu0 0.0
    %270 = vmatprep.subr.mxu0 0.0
    %271 = vmatpush2.msra.mxu0 0.0
    %272 = vmatprep.subr.mxu0 0.0
    %273 = vmatpush2.msra.mxu0 0.0
    %274 = vmatprep.subr.mxu0 0.0
    %275 = vmatpush2.msra.mxu0 0.0
    %276 = vmatprep.subr.mxu0 0.0
    %277 = vmatpush2.msra.mxu0 0.0
    %278 = vmatprep.subr.mxu0 0.0
    %279 = vmatpush2.msra.mxu0 0.0
    %280 = vmatprep.subr.mxu0 0.0
    %281 = vmatpush2.msra.mxu0 0.0
    %282 = vmatprep.subr.mxu0 0.0
    %283 = vmatpush2.msra.mxu0 0.0
    %284 = vmatprep.subr.mxu0 0.0
    %285 = vmatpush2.msra.mxu0 0.0
    %286 = vmatprep.subr.mxu0 0.0
    %287 = vmatpush2.msra.mxu0 0.0
    %288 = vmatprep.subr.mxu0 0.0
    %289 = vmatpush2.msra.mxu0 0.0
    %290 = vmatprep.subr.mxu0 0.0
    %291 = vmatpush2.msra.mxu0 0.0
    %292 = vmatprep.subr.mxu0 0.0
    %293 = vmatpush2.msra.mxu0 0.0
    %294 = vmatprep.mubr.f32.mxu0 0.0
    %295 = vmatmul.mubr.f32.gmra.mxu0 %v141
    %v296 = vpop.f32.mrf.mxu0
    %v297 = vadd.f32 %v122, %v296
    %v298 = vpop.f32.mrf.mxu0
    %v299 = vadd.f32 %v126, %v298
    %300 = vmatprep.mubr.f32.mxu0 0.0
    %301 = vmatmul.mubr.f32.gmra.mxu0 %v144
    %v302 = vpop.f32.mrf.mxu0
    %v303 = vadd.f32 %v122, %v302
    %v304 = vpop.f32.mrf.mxu0
    %v305 = vadd.f32 %v126, %v304
    %306 = vmatprep.mubr.f32.mxu0 0.0
    %307 = vmatmul.mubr.f32.gmra.mxu0 %v147
    %v308 = vpop.f32.mrf.mxu0
    %v309 = vadd.f32 %v122, %v308
    %v310 = vpop.f32.mrf.mxu0
    %v311 = vadd.f32 %v126, %v310
    %312 = vmatprep.mubr.f32.mxu0 0.0
    %313 = vmatmul.mubr.f32.gmra.mxu0 %v150
    %v314 = vpop.f32.mrf.mxu0
    %v315 = vadd.f32 %v122, %v314
    %v316 = vpop.f32.mrf.mxu0
    %v317 = vadd.f32 %v126, %v316
    %318 = vmatprep.mubr.f32.mxu0 0.0
    %319 = vmatmul.mubr.f32.gmra.mxu0 %v153
    %v320 = vpop.f32.mrf.mxu0
    %v321 = vadd.f32 %v122, %v320
    %v322 = vpop.f32.mrf.mxu0
    %v323 = vadd.f32 %v126, %v322
    %324 = vmatprep.mubr.f32.mxu0 0.0
    %325 = vmatmul.mubr.f32.gmra.mxu0 %v156
    %v326 = vpop.f32.mrf.mxu0
    %v327 = vadd.f32 %v122, %v326
    %v328 = vpop.f32.mrf.mxu0
    %v329 = vadd.f32 %v126, %v328
    %330 = vmatprep.mubr.f32.mxu0 0.0
    %331 = vmatmul.mubr.f32.gmra.mxu0 %v159
    %v332 = vpop.f32.mrf.mxu0
    %v333 = vadd.f32 %v122, %v332
    %v334 = vpop.f32.mrf.mxu0
    %v335 = vadd.f32 %v126, %v334
    %336 = vmatprep.mubr.f32.mxu0 0.0
    %337 = vmatmul.mubr.f32.gmra.mxu0 %v162
    %v338 = vpop.f32.mrf.mxu0
    %v339 = vadd.f32 %v122, %v338
    %v340 = vpop.f32.mrf.mxu0
    %v341 = vadd.f32 %v126, %v340
    %342 = vmatprep.mubr.f32.mxu0 0.0
    %343 = vmatmul.mubr.f32.gmra.mxu0 %v165
    %v344 = vpop.f32.mrf.mxu0
    %v345 = vadd.f32 %v122, %v344
    %v346 = vpop.f32.mrf.mxu0
    %v347 = vadd.f32 %v126, %v346
    %348 = vmatprep.mubr.f32.mxu0 0.0
    %349 = vmatmul.mubr.f32.gmra.mxu0 %v168
    %v350 = vpop.f32.mrf.mxu0
    %v351 = vadd.f32 %v122, %v350
    %v352 = vpop.f32.mrf.mxu0
    %v353 = vadd.f32 %v126, %v352
    %354 = vmatprep.mubr.f32.mxu0 0.0
    %355 = vmatmul.mubr.f32.gmra.mxu0 %v171
    %v356 = vpop.f32.mrf.mxu0
    %v357 = vadd.f32 %v122, %v356
    %v358 = vpop.f32.mrf.mxu0
    %v359 = vadd.f32 %v126, %v358
    %360 = vmatprep.mubr.f32.mxu0 0.0
    %361 = vmatmul.mubr.f32.gmra.mxu0 %v174
    %v362 = vpop.f32.mrf.mxu0
    %v363 = vadd.f32 %v122, %v362
    %v364 = vpop.f32.mrf.mxu0
    %v365 = vadd.f32 %v126, %v364
    %366 = vmatprep.mubr.f32.mxu0 0.0
    %367 = vmatmul.mubr.f32.gmra.mxu0 %v177
    %v368 = vpop.f32.mrf.mxu0
    %v369 = vadd.f32 %v122, %v368
    %v370 = vpop.f32.mrf.mxu0
    %v371 = vadd.f32 %v126, %v370
    %372 = vmatprep.mubr.f32.mxu0 0.0
    %373 = vmatmul.mubr.f32.gmra.mxu0 %v180
    %v374 = vpop.f32.mrf.mxu0
    %v375 = vadd.f32 %v122, %v374
    %v376 = vpop.f32.mrf.mxu0
    %v377 = vadd.f32 %v126, %v376
    %378 = vmatprep.mubr.f32.mxu0 0.0
    %379 = vmatmul.mubr.f32.gmra.mxu0 %v183
    %v380 = vpop.f32.mrf.mxu0
    %v381 = vadd.f32 %v122, %v380
    %v382 = vpop.f32.mrf.mxu0
    %v383 = vadd.f32 %v126, %v382
    %384 = vmatprep.mubr.f32.mxu0 0.0
    %385 = vmatmul.mubr.f32.gmra.mxu0 %v186
    %v386 = vpop.f32.mrf.mxu0
    %v387 = vadd.f32 %v122, %v386
    %v388 = vpop.f32.mrf.mxu0
    %v389 = vadd.f32 %v126, %v388
    %390 = vmatprep.mubr.f32.mxu0 0.0
    %391 = vmatmul.mubr.f32.gmra.mxu0 %v189
    %v392 = vpop.f32.mrf.mxu0
    %v393 = vadd.f32 %v122, %v392
    %v394 = vpop.f32.mrf.mxu0
    %v395 = vadd.f32 %v126, %v394
    %396 = vmatprep.mubr.f32.mxu0 0.0
    %397 = vmatmul.mubr.f32.gmra.mxu0 %v192
    %v398 = vpop.f32.mrf.mxu0
    %v399 = vadd.f32 %v122, %v398
    %v400 = vpop.f32.mrf.mxu0
    %v401 = vadd.f32 %v126, %v400
    %402 = vmatprep.mubr.f32.mxu0 0.0
    %403 = vmatmul.mubr.f32.gmra.mxu0 %v195
    %v404 = vpop.f32.mrf.mxu0
    %v405 = vadd.f32 %v122, %v404
    %v406 = vpop.f32.mrf.mxu0
    %v407 = vadd.f32 %v126, %v406
    %408 = vmatprep.mubr.f32.mxu0 0.0
    %409 = vmatmul.mubr.f32.gmra.mxu0 %v198
    %v410 = vpop.f32.mrf.mxu0
    %v411 = vadd.f32 %v122, %v410
    %v412 = vpop.f32.mrf.mxu0
    %v413 = vadd.f32 %v126, %v412
    %414 = vmatprep.mubr.f32.mxu0 0.0
    %415 = vmatmul.mubr.f32.gmra.mxu0 %v201
    %v416 = vpop.f32.mrf.mxu0
    %v417 = vadd.f32 %v122, %v416
    %v418 = vpop.f32.mrf.mxu0
    %v419 = vadd.f32 %v126, %v418
    %420 = vmatprep.mubr.f32.mxu0 0.0
    %421 = vmatmul.mubr.f32.gmra.mxu0 %v204
    %v422 = vpop.f32.mrf.mxu0
    %v423 = vadd.f32 %v122, %v422
    %v424 = vpop.f32.mrf.mxu0
    %v425 = vadd.f32 %v126, %v424
    %426 = vmatprep.mubr.f32.mxu0 0.0
    %427 = vmatmul.mubr.f32.gmra.mxu0 %v207
    %v428 = vpop.f32.mrf.mxu0
    %v429 = vadd.f32 %v122, %v428
    %v430 = vpop.f32.mrf.mxu0
    %v431 = vadd.f32 %v126, %v430
    %432 = vmatprep.mubr.f32.mxu0 0.0
    %433 = vmatmul.mubr.f32.gmra.mxu0 %v210
    %v434 = vpop.f32.mrf.mxu0
    %v435 = vadd.f32 %v122, %v434
    %v436 = vpop.f32.mrf.mxu0
    %v437 = vadd.f32 %v126, %v436
    %438 = vmatprep.mubr.f32.mxu0 0.0
    %439 = vmatmul.mubr.f32.gmra.mxu0 %v213
    %v440 = vpop.f32.mrf.mxu0
    %v441 = vadd.f32 %v122, %v440
    %v442 = vpop.f32.mrf.mxu0
    %v443 = vadd.f32 %v126, %v442
    %444 = vmatprep.mubr.f32.mxu0 0.0
    %445 = vmatmul.mubr.f32.gmra.mxu0 %v216
    %v446 = vpop.f32.mrf.mxu0
    %v447 = vadd.f32 %v122, %v446
    %v448 = vpop.f32.mrf.mxu0
    %v449 = vadd.f32 %v126, %v448
    %450 = vmatprep.mubr.f32.mxu0 0.0
    %451 = vmatmul.mubr.f32.gmra.mxu0 %v219
    %v452 = vpop.f32.mrf.mxu0
    %v453 = vadd.f32 %v122, %v452
    %v454 = vpop.f32.mrf.mxu0
    %v455 = vadd.f32 %v126, %v454
    %456 = vmatprep.mubr.f32.mxu0 0.0
    %457 = vmatmul.mubr.f32.gmra.mxu0 %v222
    %v458 = vpop.f32.mrf.mxu0
    %v459 = vadd.f32 %v122, %v458
    %v460 = vpop.f32.mrf.mxu0
    %v461 = vadd.f32 %v126, %v460
    %462 = vmatprep.mubr.f32.mxu0 0.0
    %463 = vmatmul.mubr.f32.gmra.mxu0 %v225
    %v464 = vpop.f32.mrf.mxu0
    %v465 = vadd.f32 %v122, %v464
    %v466 = vpop.f32.mrf.mxu0
    %v467 = vadd.f32 %v126, %v466
    %468 = vmatprep.mubr.f32.mxu0 0.0
    %469 = vmatmul.mubr.f32.gmra.mxu0 %v228
    %v470 = vpop.f32.mrf.mxu0
    %v471 = vadd.f32 %v122, %v470
    %v472 = vpop.f32.mrf.mxu0
    %v473 = vadd.f32 %v126, %v472
    %474 = vdwg.mxu0
    %475 = vmatprep.subr.mxu0 0.0
    %476 = vmatpush1.msra.mxu0 0.0
    %477 = vmatprep.subr.mxu0 0.0
    %478 = vmatpush1.msra.mxu0 0.0
    %479 = vmatprep.subr.mxu0 0.0
    %480 = vmatpush1.msra.mxu0 0.0
    %481 = vmatprep.subr.mxu0 0.0
    %482 = vmatpush1.msra.mxu0 0.0
    %483 = vmatprep.subr.mxu0 0.0
    %484 = vmatpush1.msra.mxu0 0.0
    %485 = vmatprep.subr.mxu0 0.0
    %486 = vmatpush1.msra.mxu0 0.0
    %487 = vmatprep.subr.mxu0 0.0
    %488 = vmatpush1.msra.mxu0 0.0
    %489 = vmatprep.subr.mxu0 0.0
    %490 = vmatpush1.msra.mxu0 0.0
    %491 = vmatprep.subr.mxu0 0.0
    %492 = vmatpush1.msra.mxu0 0.0
    %493 = vmatprep.subr.mxu0 0.0
    %494 = vmatpush1.msra.mxu0 0.0
    %495 = vmatprep.subr.mxu0 0.0
    %496 = vmatpush1.msra.mxu0 0.0
    %497 = vmatprep.subr.mxu0 0.0
    %498 = vmatpush1.msra.mxu0 0.0
    %499 = vmatprep.subr.mxu0 0.0
    %500 = vmatpush1.msra.mxu0 0.0
    %501 = vmatprep.subr.mxu0 0.0
    %502 = vmatpush1.msra.mxu0 0.0
    %503 = vmatprep.subr.mxu0 %v116
    %504 = vmatpush1.msra.mxu0 %v115
    %505 = vmatprep.subr.mxu0 %v112
    %506 = vmatpush1.msra.mxu0 %v111
    %507 = vmatprep.subr.mxu0 0.0
    %508 = vmatpush2.msra.mxu0 0.0
    %509 = vmatprep.subr.mxu0 0.0
    %510 = vmatpush2.msra.mxu0 0.0
    %511 = vmatprep.subr.mxu0 0.0
    %512 = vmatpush2.msra.mxu0 0.0
    %513 = vmatprep.subr.mxu0 0.0
    %514 = vmatpush2.msra.mxu0 0.0
    %515 = vmatprep.subr.mxu0 0.0
    %516 = vmatpush2.msra.mxu0 0.0
    %517 = vmatprep.subr.mxu0 0.0
    %518 = vmatpush2.msra.mxu0 0.0
    %519 = vmatprep.subr.mxu0 0.0
    %520 = vmatpush2.msra.mxu0 0.0
    %521 = vmatprep.subr.mxu0 0.0
    %522 = vmatpush2.msra.mxu0 0.0
    %523 = vmatprep.subr.mxu0 0.0
    %524 = vmatpush2.msra.mxu0 0.0
    %525 = vmatprep.subr.mxu0 0.0
    %526 = vmatpush2.msra.mxu0 0.0
    %527 = vmatprep.subr.mxu0 0.0
    %528 = vmatpush2.msra.mxu0 0.0
    %529 = vmatprep.subr.mxu0 0.0
    %530 = vmatpush2.msra.mxu0 0.0
    %531 = vmatprep.subr.mxu0 0.0
    %532 = vmatpush2.msra.mxu0 0.0
    %533 = vmatprep.subr.mxu0 0.0
    %534 = vmatpush2.msra.mxu0 0.0
    %535 = vmatprep.subr.mxu0 0.0
    %536 = vmatpush2.msra.mxu0 0.0
    %537 = vmatprep.subr.mxu0 0.0
    %538 = vmatpush2.msra.mxu0 0.0
    %539 = vmatprep.mubr.f32.mxu0 0.0
    %540 = vmatmul.mubr.f32.gmra.mxu0 %v141
    %v541 = vpop.f32.mrf.mxu0
    %v542 = vadd.f32 %v130, %v541
    %v543 = vpop.f32.mrf.mxu0
    %v544 = vadd.f32 %v134, %v543
    %545 = vmatprep.mubr.f32.mxu0 0.0
    %546 = vmatmul.mubr.f32.gmra.mxu0 %v144
    %v547 = vpop.f32.mrf.mxu0
    %v548 = vadd.f32 %v130, %v547
    %v549 = vpop.f32.mrf.mxu0
    %v550 = vadd.f32 %v134, %v549
    %551 = vmatprep.mubr.f32.mxu0 0.0
    %552 = vmatmul.mubr.f32.gmra.mxu0 %v147
    %v553 = vpop.f32.mrf.mxu0
    %v554 = vadd.f32 %v130, %v553
    %v555 = vpop.f32.mrf.mxu0
    %v556 = vadd.f32 %v134, %v555
    %557 = vmatprep.mubr.f32.mxu0 0.0
    %558 = vmatmul.mubr.f32.gmra.mxu0 %v150
    %v559 = vpop.f32.mrf.mxu0
    %v560 = vadd.f32 %v130, %v559
    %v561 = vpop.f32.mrf.mxu0
    %v562 = vadd.f32 %v134, %v561
    %563 = vmatprep.mubr.f32.mxu0 0.0
    %564 = vmatmul.mubr.f32.gmra.mxu0 %v153
    %v565 = vpop.f32.mrf.mxu0
    %v566 = vadd.f32 %v130, %v565
    %v567 = vpop.f32.mrf.mxu0
    %v568 = vadd.f32 %v134, %v567
    %569 = vmatprep.mubr.f32.mxu0 0.0
    %570 = vmatmul.mubr.f32.gmra.mxu0 %v156
    %v571 = vpop.f32.mrf.mxu0
    %v572 = vadd.f32 %v130, %v571
    %v573 = vpop.f32.mrf.mxu0
    %v574 = vadd.f32 %v134, %v573
    %575 = vmatprep.mubr.f32.mxu0 0.0
    %576 = vmatmul.mubr.f32.gmra.mxu0 %v159
    %v577 = vpop.f32.mrf.mxu0
    %v578 = vadd.f32 %v130, %v577
    %v579 = vpop.f32.mrf.mxu0
    %v580 = vadd.f32 %v134, %v579
    %581 = vmatprep.mubr.f32.mxu0 0.0
    %582 = vmatmul.mubr.f32.gmra.mxu0 %v162
    %v583 = vpop.f32.mrf.mxu0
    %v584 = vadd.f32 %v130, %v583
    %v585 = vpop.f32.mrf.mxu0
    %v586 = vadd.f32 %v134, %v585
    %587 = vmatprep.mubr.f32.mxu0 0.0
    %588 = vmatmul.mubr.f32.gmra.mxu0 %v165
    %v589 = vpop.f32.mrf.mxu0
    %v590 = vadd.f32 %v130, %v589
    %v591 = vpop.f32.mrf.mxu0
    %v592 = vadd.f32 %v134, %v591
    %593 = vmatprep.mubr.f32.mxu0 0.0
    %594 = vmatmul.mubr.f32.gmra.mxu0 %v168
    %v595 = vpop.f32.mrf.mxu0
    %v596 = vadd.f32 %v130, %v595
    %v597 = vpop.f32.mrf.mxu0
    %v598 = vadd.f32 %v134, %v597
    %599 = vmatprep.mubr.f32.mxu0 0.0
    %600 = vmatmul.mubr.f32.gmra.mxu0 %v171
    %v601 = vpop.f32.mrf.mxu0
    %v602 = vadd.f32 %v130, %v601
    %v603 = vpop.f32.mrf.mxu0
    %v604 = vadd.f32 %v134, %v603
    %605 = vmatprep.mubr.f32.mxu0 0.0
    %606 = vmatmul.mubr.f32.gmra.mxu0 %v174
    %v607 = vpop.f32.mrf.mxu0
    %v608 = vadd.f32 %v130, %v607
    %v609 = vpop.f32.mrf.mxu0
    %v610 = vadd.f32 %v134, %v609
    %611 = vmatprep.mubr.f32.mxu0 0.0
    %612 = vmatmul.mubr.f32.gmra.mxu0 %v177
    %v613 = vpop.f32.mrf.mxu0
    %v614 = vadd.f32 %v130, %v613
    %v615 = vpop.f32.mrf.mxu0
    %v616 = vadd.f32 %v134, %v615
    %617 = vmatprep.mubr.f32.mxu0 0.0
    %618 = vmatmul.mubr.f32.gmra.mxu0 %v180
    %v619 = vpop.f32.mrf.mxu0
    %v620 = vadd.f32 %v130, %v619
    %v621 = vpop.f32.mrf.mxu0
    %v622 = vadd.f32 %v134, %v621
    %623 = vmatprep.mubr.f32.mxu0 0.0
    %624 = vmatmul.mubr.f32.gmra.mxu0 %v183
    %v625 = vpop.f32.mrf.mxu0
    %v626 = vadd.f32 %v130, %v625
    %v627 = vpop.f32.mrf.mxu0
    %v628 = vadd.f32 %v134, %v627
    %629 = vmatprep.mubr.f32.mxu0 0.0
    %630 = vmatmul.mubr.f32.gmra.mxu0 %v186
    %v631 = vpop.f32.mrf.mxu0
    %v632 = vadd.f32 %v130, %v631
    %v633 = vpop.f32.mrf.mxu0
    %v634 = vadd.f32 %v134, %v633
    %635 = vmatprep.mubr.f32.mxu0 0.0
    %636 = vmatmul.mubr.f32.gmra.mxu0 %v189
    %v637 = vpop.f32.mrf.mxu0
    %v638 = vadd.f32 %v130, %v637
    %v639 = vpop.f32.mrf.mxu0
    %v640 = vadd.f32 %v134, %v639
    %641 = vmatprep.mubr.f32.mxu0 0.0
    %642 = vmatmul.mubr.f32.gmra.mxu0 %v192
    %v643 = vpop.f32.mrf.mxu0
    %v644 = vadd.f32 %v130, %v643
    %v645 = vpop.f32.mrf.mxu0
    %v646 = vadd.f32 %v134, %v645
    %647 = vmatprep.mubr.f32.mxu0 0.0
    %648 = vmatmul.mubr.f32.gmra.mxu0 %v195
    %v649 = vpop.f32.mrf.mxu0
    %v650 = vadd.f32 %v130, %v649
    %v651 = vpop.f32.mrf.mxu0
    %v652 = vadd.f32 %v134, %v651
    %653 = vmatprep.mubr.f32.mxu0 0.0
    %654 = vmatmul.mubr.f32.gmra.mxu0 %v198
    %v655 = vpop.f32.mrf.mxu0
    %v656 = vadd.f32 %v130, %v655
    %v657 = vpop.f32.mrf.mxu0
    %v658 = vadd.f32 %v134, %v657
    %659 = vmatprep.mubr.f32.mxu0 0.0
    %660 = vmatmul.mubr.f32.gmra.mxu0 %v201
    %v661 = vpop.f32.mrf.mxu0
    %v662 = vadd.f32 %v130, %v661
    %v663 = vpop.f32.mrf.mxu0
    %v664 = vadd.f32 %v134, %v663
    %665 = vmatprep.mubr.f32.mxu0 0.0
    %666 = vmatmul.mubr.f32.gmra.mxu0 %v204
    %v667 = vpop.f32.mrf.mxu0
    %v668 = vadd.f32 %v130, %v667
    %v669 = vpop.f32.mrf.mxu0
    %v670 = vadd.f32 %v134, %v669
    %671 = vmatprep.mubr.f32.mxu0 0.0
    %672 = vmatmul.mubr.f32.gmra.mxu0 %v207
    %v673 = vpop.f32.mrf.mxu0
    %v674 = vadd.f32 %v130, %v673
    %v675 = vpop.f32.mrf.mxu0
    %v676 = vadd.f32 %v134, %v675
    %677 = vmatprep.mubr.f32.mxu0 0.0
    %678 = vmatmul.mubr.f32.gmra.mxu0 %v210
    %v679 = vpop.f32.mrf.mxu0
    %v680 = vadd.f32 %v130, %v679
    %v681 = vpop.f32.mrf.mxu0
    %v682 = vadd.f32 %v134, %v681
    %683 = vmatprep.mubr.f32.mxu0 0.0
    %684 = vmatmul.mubr.f32.gmra.mxu0 %v213
    %v685 = vpop.f32.mrf.mxu0
    %v686 = vadd.f32 %v130, %v685
    %v687 = vpop.f32.mrf.mxu0
    %v688 = vadd.f32 %v134, %v687
    %689 = vmatprep.mubr.f32.mxu0 0.0
    %690 = vmatmul.mubr.f32.gmra.mxu0 %v216
    %v691 = vpop.f32.mrf.mxu0
    %v692 = vadd.f32 %v130, %v691
    %v693 = vpop.f32.mrf.mxu0
    %v694 = vadd.f32 %v134, %v693
    %695 = vmatprep.mubr.f32.mxu0 0.0
    %696 = vmatmul.mubr.f32.gmra.mxu0 %v219
    %v697 = vpop.f32.mrf.mxu0
    %v698 = vadd.f32 %v130, %v697
    %v699 = vpop.f32.mrf.mxu0
    %v700 = vadd.f32 %v134, %v699
    %701 = vmatprep.mubr.f32.mxu0 0.0
    %702 = vmatmul.mubr.f32.gmra.mxu0 %v222
    %v703 = vpop.f32.mrf.mxu0
    %v704 = vadd.f32 %v130, %v703
    %v705 = vpop.f32.mrf.mxu0
    %v706 = vadd.f32 %v134, %v705
    %707 = vmatprep.mubr.f32.mxu0 0.0
    %708 = vmatmul.mubr.f32.gmra.mxu0 %v225
    %v709 = vpop.f32.mrf.mxu0
    %v710 = vadd.f32 %v130, %v709
    %v711 = vpop.f32.mrf.mxu0
    %v712 = vadd.f32 %v134, %v711
    %713 = vmatprep.mubr.f32.mxu0 0.0
    %714 = vmatmul.mubr.f32.gmra.mxu0 %v228
    %v715 = vpop.f32.mrf.mxu0
    %v716 = vadd.f32 %v130, %v715
    %v717 = vpop.f32.mrf.mxu0
    %v718 = vadd.f32 %v134, %v717
    %719 = vdwg.mxu0
    %720 = vst [vmem:[#allocation2] sm:$0xff] %v297
    %721 = vst [vmem:[#allocation2 + $0x8] sm:$0xff] %v299
    %722 = vst [vmem:[#allocation2 + $0x10] sm:$0xff] %v542
    %723 = vst [vmem:[#allocation2 + $0x18] sm:$0xff] %v544
    %724 = vst [vmem:[#allocation2 + $0x20] sm:$0xff] %v303
    %725 = vst [vmem:[#allocation2 + $0x28] sm:$0xff] %v305
    %726 = vst [vmem:[#allocation2 + $0x30] sm:$0xff] %v548
    %727 = vst [vmem:[#allocation2 + $0x38] sm:$0xff] %v550
    %728 = vst [vmem:[#allocation2 + $0x40] sm:$0xff] %v309
    %729 = vst [vmem:[#allocation2 + $0x48] sm:$0xff] %v311
    %730 = vst [vmem:[#allocation2 + $0x50] sm:$0xff] %v554
    %731 = vst [vmem:[#allocation2 + $0x58] sm:$0xff] %v556
    %732 = vst [vmem:[#allocation2 + $0x60] sm:$0xff] %v315
    %733 = vst [vmem:[#allocation2 + $0x68] sm:$0xff] %v317
    %734 = vst [vmem:[#allocation2 + $0x70] sm:$0xff] %v560
    %735 = vst [vmem:[#allocation2 + $0x78] sm:$0xff] %v562
    %736 = vst [vmem:[#allocation2 + $0x80] sm:$0xff] %v321
    %737 = vst [vmem:[#allocation2 + $0x88] sm:$0xff] %v323
    %738 = vst [vmem:[#allocation2 + $0x90] sm:$0xff] %v566
    %739 = vst [vmem:[#allocation2 + $0x98] sm:$0xff] %v568
    %740 = vst [vmem:[#allocation2 + $0xa0] sm:$0xff] %v327
    %741 = vst [vmem:[#allocation2 + $0xa8] sm:$0xff] %v329
    %742 = vst [vmem:[#allocation2 + $0xb0] sm:$0xff] %v572
    %743 = vst [vmem:[#allocation2 + $0xb8] sm:$0xff] %v574
    %744 = vst [vmem:[#allocation2 + $0xc0] sm:$0xff] %v333
    %745 = vst [vmem:[#allocation2 + $0xc8] sm:$0xff] %v335
    %746 = vst [vmem:[#allocation2 + $0xd0] sm:$0xff] %v578
    %747 = vst [vmem:[#allocation2 + $0xd8] sm:$0xff] %v580
    %748 = vst [vmem:[#allocation2 + $0xe0] sm:$0xff] %v339
    %749 = vst [vmem:[#allocation2 + $0xe8] sm:$0xff] %v341
    %750 = vst [vmem:[#allocation2 + $0xf0] sm:$0xff] %v584
    %751 = vst [vmem:[#allocation2 + $0xf8] sm:$0xff] %v586
    %752 = vst [vmem:[#allocation2 + $0x100] sm:$0xff] %v345
    %753 = vst [vmem:[#allocation2 + $0x108] sm:$0xff] %v347
    %754 = vst [vmem:[#allocation2 + $0x110] sm:$0xff] %v590
    %755 = vst [vmem:[#allocation2 + $0x118] sm:$0xff] %v592
    %756 = vst [vmem:[#allocation2 + $0x120] sm:$0xff] %v351
    %757 = vst [vmem:[#allocation2 + $0x128] sm:$0xff] %v353
    %758 = vst [vmem:[#allocation2 + $0x130] sm:$0xff] %v596
    %759 = vst [vmem:[#allocation2 + $0x138] sm:$0xff] %v598
    %760 = vst [vmem:[#allocation2 + $0x140] sm:$0xff] %v357
    %761 = vst [vmem:[#allocation2 + $0x148] sm:$0xff] %v359
    %762 = vst [vmem:[#allocation2 + $0x150] sm:$0xff] %v602
    %763 = vst [vmem:[#allocation2 + $0x158] sm:$0xff] %v604
    %764 = vst [vmem:[#allocation2 + $0x160] sm:$0xff] %v363
    %765 = vst [vmem:[#allocation2 + $0x168] sm:$0xff] %v365
    %766 = vst [vmem:[#allocation2 + $0x170] sm:$0xff] %v608
    %767 = vst [vmem:[#allocation2 + $0x178] sm:$0xff] %v610
    %768 = vst [vmem:[#allocation2 + $0x180] sm:$0xff] %v369
    %769 = vst [vmem:[#allocation2 + $0x188] sm:$0xff] %v371
    %770 = vst [vmem:[#allocation2 + $0x190] sm:$0xff] %v614
    %771 = vst [vmem:[#allocation2 + $0x198] sm:$0xff] %v616
    %772 = vst [vmem:[#allocation2 + $0x1a0] sm:$0xff] %v375
    %773 = vst [vmem:[#allocation2 + $0x1a8] sm:$0xff] %v377
    %774 = vst [vmem:[#allocation2 + $0x1b0] sm:$0xff] %v620
    %775 = vst [vmem:[#allocation2 + $0x1b8] sm:$0xff] %v622
    %776 = vst [vmem:[#allocation2 + $0x1c0] sm:$0xff] %v381
    %777 = vst [vmem:[#allocation2 + $0x1c8] sm:$0xff] %v383
    %778 = vst [vmem:[#allocation2 + $0x1d0] sm:$0xff] %v626
    %779 = vst [vmem:[#allocation2 + $0x1d8] sm:$0xff] %v628
    %780 = vst [vmem:[#allocation2 + $0x1e0] sm:$0xff] %v387
    %781 = vst [vmem:[#allocation2 + $0x1e8] sm:$0xff] %v389
    %782 = vst [vmem:[#allocation2 + $0x1f0] sm:$0xff] %v632
    %783 = vst [vmem:[#allocation2 + $0x1f8] sm:$0xff] %v634
    %784 = vst [vmem:[#allocation2 + $0x200] sm:$0xff] %v393
    %785 = vst [vmem:[#allocation2 + $0x208] sm:$0xff] %v395
    %786 = vst [vmem:[#allocation2 + $0x210] sm:$0xff] %v638
    %787 = vst [vmem:[#allocation2 + $0x218] sm:$0xff] %v640
    %788 = vst [vmem:[#allocation2 + $0x220] sm:$0xff] %v399
    %789 = vst [vmem:[#allocation2 + $0x228] sm:$0xff] %v401
    %790 = vst [vmem:[#allocation2 + $0x230] sm:$0xff] %v644
    %791 = vst [vmem:[#allocation2 + $0x238] sm:$0xff] %v646
    %792 = vst [vmem:[#allocation2 + $0x240] sm:$0xff] %v405
    %793 = vst [vmem:[#allocation2 + $0x248] sm:$0xff] %v407
    %794 = vst [vmem:[#allocation2 + $0x250] sm:$0xff] %v650
    %795 = vst [vmem:[#allocation2 + $0x258] sm:$0xff] %v652
    %796 = vst [vmem:[#allocation2 + $0x260] sm:$0xff] %v411
    %797 = vst [vmem:[#allocation2 + $0x268] sm:$0xff] %v413
    %798 = vst [vmem:[#allocation2 + $0x270] sm:$0xff] %v656
    %799 = vst [vmem:[#allocation2 + $0x278] sm:$0xff] %v658
    %800 = vst [vmem:[#allocation2 + $0x280] sm:$0xff] %v417
    %801 = vst [vmem:[#allocation2 + $0x288] sm:$0xff] %v419
    %802 = vst [vmem:[#allocation2 + $0x290] sm:$0xff] %v662
    %803 = vst [vmem:[#allocation2 + $0x298] sm:$0xff] %v664
    %804 = vst [vmem:[#allocation2 + $0x2a0] sm:$0xff] %v423
    %805 = vst [vmem:[#allocation2 + $0x2a8] sm:$0xff] %v425
    %806 = vst [vmem:[#allocation2 + $0x2b0] sm:$0xff] %v668
    %807 = vst [vmem:[#allocation2 + $0x2b8] sm:$0xff] %v670
    %808 = vst [vmem:[#allocation2 + $0x2c0] sm:$0xff] %v429
    %809 = vst [vmem:[#allocation2 + $0x2c8] sm:$0xff] %v431
    %810 = vst [vmem:[#allocation2 + $0x2d0] sm:$0xff] %v674
    %811 = vst [vmem:[#allocation2 + $0x2d8] sm:$0xff] %v676
    %812 = vst [vmem:[#allocation2 + $0x2e0] sm:$0xff] %v435
    %813 = vst [vmem:[#allocation2 + $0x2e8] sm:$0xff] %v437
    %814 = vst [vmem:[#allocation2 + $0x2f0] sm:$0xff] %v680
    %815 = vst [vmem:[#allocation2 + $0x2f8] sm:$0xff] %v682
    %816 = vst [vmem:[#allocation2 + $0x300] sm:$0xff] %v441
    %817 = vst [vmem:[#allocation2 + $0x308] sm:$0xff] %v443
    %818 = vst [vmem:[#allocation2 + $0x310] sm:$0xff] %v686
    %819 = vst [vmem:[#allocation2 + $0x318] sm:$0xff] %v688
    %820 = vst [vmem:[#allocation2 + $0x320] sm:$0xff] %v447
    %821 = vst [vmem:[#allocation2 + $0x328] sm:$0xff] %v449
    %822 = vst [vmem:[#allocation2 + $0x330] sm:$0xff] %v692
    %823 = vst [vmem:[#allocation2 + $0x338] sm:$0xff] %v694
    %824 = vst [vmem:[#allocation2 + $0x340] sm:$0xff] %v453
    %825 = vst [vmem:[#allocation2 + $0x348] sm:$0xff] %v455
    %826 = vst [vmem:[#allocation2 + $0x350] sm:$0xff] %v698
    %827 = vst [vmem:[#allocation2 + $0x358] sm:$0xff] %v700
    %828 = vst [vmem:[#allocation2 + $0x360] sm:$0xff] %v459
    %829 = vst [vmem:[#allocation2 + $0x368] sm:$0xff] %v461
    %830 = vst [vmem:[#allocation2 + $0x370] sm:$0xff] %v704
    %831 = vst [vmem:[#allocation2 + $0x378] sm:$0xff] %v706
    %832 = vst [vmem:[#allocation2 + $0x380] sm:$0xff] %v465
    %833 = vst [vmem:[#allocation2 + $0x388] sm:$0xff] %v467
    %834 = vst [vmem:[#allocation2 + $0x390] sm:$0xff] %v710
    %835 = vst [vmem:[#allocation2 + $0x398] sm:$0xff] %v712
    %836 = vst [vmem:[#allocation2 + $0x3a0] sm:$0xff] %v471
    %837 = vst [vmem:[#allocation2 + $0x3a8] sm:$0xff] %v473
    %838 = vst [vmem:[#allocation2 + $0x3b0] sm:$0xff] %v716
    %839 = vst [vmem:[#allocation2 + $0x3b8] sm:$0xff] %v718
    %v840 = vld [vmem:[%s2] sm:$0xff]
    %v841 = vld [vmem:[%s2 + $0x8] sm:$0xff]
    %v842 = vld [vmem:[%s2 + $0x10] sm:$0xff]
    %v843 = vld [vmem:[%s8] sm:$0xf]
    %v845 = vlaneseq
    %v846 = vshrl.u32 %v845, 7
    %v847 = vsub.s32 0, %v846
    %v848 = vrot.slane %v843, %v847
    %v849 = vlaneseq
    %v850 = vshrl.u32 %v849, 7
    %v851 = vsub.s32 1, %v850
    %v852 = vrot.slane %v843, %v851
    %v853 = vlaneseq
    %v854 = vshrl.u32 %v853, 7
    %v855 = vsub.s32 2, %v854
    %v856 = vrot.slane %v843, %v855
    %v857 = vlaneseq
    %v858 = vshrl.u32 %v857, 7
    %v859 = vsub.s32 3, %v858
    %v860 = vrot.slane %v843, %v859
    %s865 = sld [smem:[#allocation4]]
    // While loop
    $region46: #{tpu_custom_call.1} parent=1 // loop_pre_header
      _
    $region47: #{tpu_custom_call.1} parent=1 // loop_header
      %s867 = sphi 0, %s869
      %p868 = scmp.ge.s32.totalorder %s867, %s865
      %v872 = vphi 0.0, %v1235
      %v873 = vphi 0.0, %v1236
      %v874 = vphi 0.0, %v1237
      %v875 = vphi 0.0, %v1238
      %v876 = vphi 0.0, %v1239
      %v877 = vphi 0.0, %v1240
      %v878 = vphi 0.0, %v1785
      %v879 = vphi 0.0, %v1786
      %v880 = vphi 0.0, %v1787
      %v881 = vphi 0.0, %v1788
      %v882 = vphi 0.0, %v1789
      %v883 = vphi 0.0, %v1790
    $region48: #{tpu_custom_call.1} parent=1 // loop_header_branch
      %871 = sbr.rel (%p868) target = $region52
    $region49: #{tpu_custom_call.1} parent=1 // loop_body
      %v884 = vstv %s867
      %vm885 = vcmp.lt.s32.totalorder %v884, %v840
      %vm886 = vcmp.lt.s32.totalorder %v884, %v841
      %vm887 = vcmp.lt.s32.totalorder %v884, %v842
      %v888 = vsel %vm885, 1, 0
      %v889 = vsel %vm886, 1, 0
      %v890 = vsel %vm887, 1, 0
      %891 = vset.pattern.permute.xlu0 0
      %892 = vperm.xlu0 %891, %v888
      %v893 = vpop.permute.xlu0 %892
      %894 = vset.pattern.permute.xlu0 0
      %895 = vperm.xlu0 %894, %v889
      %v896 = vpop.permute.xlu0 %895
      %897 = vset.pattern.permute.xlu0 0
      %898 = vperm.xlu0 %897, %v890
      %v899 = vpop.permute.xlu0 %898
      %vm900 = vcmp.eq.s32.totalorder %v893, 1
      %vm901 = vcmp.eq.s32.totalorder %v896, 1
      %vm902 = vcmp.eq.s32.totalorder %v899, 1
      %s903 = smul.u32 %s867, 24
      %s904 = sshra.s32 %s903, 3
      %s905 = sand.u32 %s903, 7
      %s906 = smul.u32 %s904, 4
      %s907 = smul.addr %s906, 8
      %s908 = scalar_lea.vmem [#allocation2], %s907
      %v909 = vld [vmem:[%s908] sm:$0xff]
      %v910 = vld [vmem:[%s908 + $0x8] sm:$0xff]
      %v911 = vld [vmem:[%s908 + $0x10] sm:$0xff]
      %v912 = vld [vmem:[%s908 + $0x18] sm:$0xff]
      %v913 = vld [vmem:[%s908 + $0x20] sm:$0xff]
      %v914 = vld [vmem:[%s908 + $0x28] sm:$0xff]
      %v915 = vld [vmem:[%s908 + $0x30] sm:$0xff]
      %v916 = vld [vmem:[%s908 + $0x38] sm:$0xff]
      %v917 = vld [vmem:[%s908 + $0x40] sm:$0xff]
      %v918 = vld [vmem:[%s908 + $0x48] sm:$0xff]
      %v919 = vld [vmem:[%s908 + $0x50] sm:$0xff]
      %v920 = vld [vmem:[%s908 + $0x58] sm:$0xff]
      %v921 = vld [vmem:[#allocation5] sm:$0xff]
      %v922 = vld [vmem:[#allocation5 + $0x8] sm:$0xff]
      %v923 = vld [vmem:[#allocation5 + $0x10] sm:$0xff]
      %v924 = vld [vmem:[#allocation5 + $0x18] sm:$0xff]
      %v925 = vld [vmem:[#allocation5 + $0x20] sm:$0xff]
      %v926 = vld [vmem:[#allocation5 + $0x28] sm:$0xff]
      %v927 = vld [vmem:[#allocation5 + $0x30] sm:$0xff]
      %v928 = vld [vmem:[#allocation5 + $0x38] sm:$0xff]
      %v929 = vld [vmem:[#allocation5 + $0x40] sm:$0xff]
      %v930 = vld [vmem:[#allocation5 + $0x48] sm:$0xff]
      %v931 = vld [vmem:[#allocation5 + $0x50] sm:$0xff]
      %v932 = vld [vmem:[#allocation5 + $0x58] sm:$0xff]
      %v933 = vld [vmem:[#allocation5 + $0x60] sm:$0xff]
      %v934 = vld [vmem:[#allocation5 + $0x68] sm:$0xff]
      %v935 = vld [vmem:[#allocation5 + $0x70] sm:$0xff]
      %v936 = vld [vmem:[#allocation5 + $0x78] sm:$0xff]
      %v937 = vld [vmem:[#allocation5 + $0x80] sm:$0xff]
      %v938 = vld [vmem:[#allocation5 + $0x88] sm:$0xff]
      %v939 = vld [vmem:[#allocation5 + $0x90] sm:$0xff]
      %v940 = vld [vmem:[#allocation5 + $0x98] sm:$0xff]
      %v941 = vld [vmem:[#allocation5 + $0xa0] sm:$0xff]
      %v942 = vld [vmem:[#allocation5 + $0xa8] sm:$0xff]
      %v943 = vld [vmem:[#allocation5 + $0xb0] sm:$0xff]
      %v944 = vld [vmem:[#allocation5 + $0xb8] sm:$0xff]
      %v945 = vld [vmem:[#allocation5 + $0xc0] sm:$0xff]
      %v946 = vld [vmem:[#allocation5 + $0xc8] sm:$0xff]
      %v947 = vld [vmem:[#allocation5 + $0xd0] sm:$0xff]
      %v948 = vld [vmem:[#allocation5 + $0xd8] sm:$0xff]
      %v949 = vld [vmem:[#allocation5 + $0xe0] sm:$0xff]
      %v950 = vld [vmem:[#allocation5 + $0xe8] sm:$0xff]
      %v951 = vld [vmem:[#allocation5 + $0xf0] sm:$0xff]
      %v952 = vld [vmem:[#allocation5 + $0xf8] sm:$0xff]
      %v953 = vld [vmem:[#allocation5 + $0x100] sm:$0xff]
      %v954 = vld [vmem:[#allocation5 + $0x108] sm:$0xff]
      %v955 = vld [vmem:[#allocation5 + $0x110] sm:$0xff]
      %v956 = vld [vmem:[#allocation5 + $0x118] sm:$0xff]
      %v957 = vld [vmem:[#allocation5 + $0x120] sm:$0xff]
      %v958 = vld [vmem:[#allocation5 + $0x128] sm:$0xff]
      %v959 = vld [vmem:[#allocation5 + $0x130] sm:$0xff]
      %v960 = vld [vmem:[#allocation5 + $0x138] sm:$0xff]
      %v961 = vld [vmem:[#allocation5 + $0x140] sm:$0xff]
      %v962 = vld [vmem:[#allocation5 + $0x148] sm:$0xff]
      %v963 = vld [vmem:[#allocation5 + $0x150] sm:$0xff]
      %v964 = vld [vmem:[#allocation5 + $0x158] sm:$0xff]
      %v965 = vld [vmem:[#allocation5 + $0x160] sm:$0xff]
      %v966 = vld [vmem:[#allocation5 + $0x168] sm:$0xff]
      %v967 = vld [vmem:[#allocation5 + $0x170] sm:$0xff]
      %v968 = vld [vmem:[#allocation5 + $0x178] sm:$0xff]
      %v969 = vld [vmem:[#allocation5 + $0x180] sm:$0xff]
      %v970 = vld [vmem:[#allocation5 + $0x188] sm:$0xff]
      %v971 = vld [vmem:[#allocation5 + $0x190] sm:$0xff]
      %v972 = vld [vmem:[#allocation5 + $0x198] sm:$0xff]
      %v973 = vld [vmem:[#allocation5 + $0x1a0] sm:$0xff]
      %v974 = vld [vmem:[#allocation5 + $0x1a8] sm:$0xff]
      %v975 = vld [vmem:[#allocation5 + $0x1b0] sm:$0xff]
      %v976 = vld [vmem:[#allocation5 + $0x1b8] sm:$0xff]
      %v977 = vld [vmem:[#allocation5 + $0x1c0] sm:$0xff]
      %v978 = vld [vmem:[#allocation5 + $0x1c8] sm:$0xff]
      %v979 = vld [vmem:[#allocation5 + $0x1d0] sm:$0xff]
      %v980 = vld [vmem:[#allocation5 + $0x1d8] sm:$0xff]
      %v981 = vld [vmem:[#allocation5 + $0x1e0] sm:$0xff]
      %v982 = vld [vmem:[#allocation5 + $0x1e8] sm:$0xff]
      %v983 = vld [vmem:[#allocation5 + $0x1f0] sm:$0xff]
      %v984 = vld [vmem:[#allocation5 + $0x1f8] sm:$0xff]
      %985 = vmatprep.subr.mxu0 %v982
      %986 = vmatpush1.msra.mxu0 %v981
      %987 = vmatprep.subr.mxu0 %v978
      %988 = vmatpush1.msra.mxu0 %v977
      %989 = vmatprep.subr.mxu0 %v974
      %990 = vmatpush1.msra.mxu0 %v973
      %991 = vmatprep.subr.mxu0 %v970
      %992 = vmatpush1.msra.mxu0 %v969
      %993 = vmatprep.subr.mxu0 %v966
      %994 = vmatpush1.msra.mxu0 %v965
      %995 = vmatprep.subr.mxu0 %v962
      %996 = vmatpush1.msra.mxu0 %v961
      %997 = vmatprep.subr.mxu0 %v958
      %998 = vmatpush1.msra.mxu0 %v957
      %999 = vmatprep.subr.mxu0 %v954
      %1000 = vmatpush1.msra.mxu0 %v953
      %1001 = vmatprep.subr.mxu0 %v950
      %1002 = vmatpush1.msra.mxu0 %v949
      %1003 = vmatprep.subr.mxu0 %v946
      %1004 = vmatpush1.msra.mxu0 %v945
      %1005 = vmatprep.subr.mxu0 %v942
      %1006 = vmatpush1.msra.mxu0 %v941
      %1007 = vmatprep.subr.mxu0 %v938
      %1008 = vmatpush1.msra.mxu0 %v937
      %1009 = vmatprep.subr.mxu0 %v934
      %1010 = vmatpush1.msra.mxu0 %v933
      %1011 = vmatprep.subr.mxu0 %v930
      %1012 = vmatpush1.msra.mxu0 %v929
      %1013 = vmatprep.subr.mxu0 %v926
      %1014 = vmatpush1.msra.mxu0 %v925
      %1015 = vmatprep.subr.mxu0 %v922
      %1016 = vmatpush1.msra.mxu0 %v921
      %1017 = vmatprep.subr.mxu0 0.0
      %1018 = vmatpush2.msra.mxu0 0.0
      %1019 = vmatprep.subr.mxu0 0.0
      %1020 = vmatpush2.msra.mxu0 0.0
      %1021 = vmatprep.subr.mxu0 0.0
      %1022 = vmatpush2.msra.mxu0 0.0
      %1023 = vmatprep.subr.mxu0 0.0
      %1024 = vmatpush2.msra.mxu0 0.0
      %1025 = vmatprep.subr.mxu0 0.0
      %1026 = vmatpush2.msra.mxu0 0.0
      %1027 = vmatprep.subr.mxu0 0.0
      %1028 = vmatpush2.msra.mxu0 0.0
      %1029 = vmatprep.subr.mxu0 0.0
      %1030 = vmatpush2.msra.mxu0 0.0
      %1031 = vmatprep.subr.mxu0 0.0
      %1032 = vmatpush2.msra.mxu0 0.0
      %1033 = vmatprep.subr.mxu0 0.0
      %1034 = vmatpush2.msra.mxu0 0.0
      %1035 = vmatprep.subr.mxu0 0.0
      %1036 = vmatpush2.msra.mxu0 0.0
      %1037 = vmatprep.subr.mxu0 0.0
      %1038 = vmatpush2.msra.mxu0 0.0
      %1039 = vmatprep.subr.mxu0 0.0
      %1040 = vmatpush2.msra.mxu0 0.0
      %1041 = vmatprep.subr.mxu0 0.0
      %1042 = vmatpush2.msra.mxu0 0.0
      %1043 = vmatprep.subr.mxu0 0.0
      %1044 = vmatpush2.msra.mxu0 0.0
      %1045 = vmatprep.subr.mxu0 0.0
      %1046 = vmatpush2.msra.mxu0 0.0
      %1047 = vmatprep.subr.mxu0 0.0
      %1048 = vmatpush2.msra.mxu0 0.0
      %1049 = vmatprep.mubr.f32.mxu0 0.0
      %1050 = vmatmul.mubr.f32.gmra.mxu0 %v872
      %v1051 = vpop.f32.mrf.mxu0
      %v1052 = vadd.f32 0.0, %v1051
      %v1053 = vpop.f32.mrf.mxu0
      %v1054 = vadd.f32 0.0, %v1053
      %1055 = vmatprep.mubr.f32.mxu0 0.0
      %1056 = vmatmul.mubr.f32.gmra.mxu0 %v873
      %v1057 = vpop.f32.mrf.mxu0
      %v1058 = vadd.f32 0.0, %v1057
      %v1059 = vpop.f32.mrf.mxu0
      %v1060 = vadd.f32 0.0, %v1059
      %1061 = vmatprep.mubr.f32.mxu0 0.0
      %1062 = vmatmul.mubr.f32.gmra.mxu0 %v874
      %v1063 = vpop.f32.mrf.mxu0
      %v1064 = vadd.f32 0.0, %v1063
      %v1065 = vpop.f32.mrf.mxu0
      %v1066 = vadd.f32 0.0, %v1065
      %1067 = vdwg.mxu0
      %1068 = vmatprep.subr.mxu0 %v984
      %1069 = vmatpush1.msra.mxu0 %v983
      %1070 = vmatprep.subr.mxu0 %v980
      %1071 = vmatpush1.msra.mxu0 %v979
      %1072 = vmatprep.subr.mxu0 %v976
      %1073 = vmatpush1.msra.mxu0 %v975
      %1074 = vmatprep.subr.mxu0 %v972
      %1075 = vmatpush1.msra.mxu0 %v971
      %1076 = vmatprep.subr.mxu0 %v968
      %1077 = vmatpush1.msra.mxu0 %v967
      %1078 = vmatprep.subr.mxu0 %v964
      %1079 = vmatpush1.msra.mxu0 %v963
      %1080 = vmatprep.subr.mxu0 %v960
      %1081 = vmatpush1.msra.mxu0 %v959
      %1082 = vmatprep.subr.mxu0 %v956
      %1083 = vmatpush1.msra.mxu0 %v955
      %1084 = vmatprep.subr.mxu0 %v952
      %1085 = vmatpush1.msra.mxu0 %v951
      %1086 = vmatprep.subr.mxu0 %v948
      %1087 = vmatpush1.msra.mxu0 %v947
      %1088 = vmatprep.subr.mxu0 %v944
      %1089 = vmatpush1.msra.mxu0 %v943
      %1090 = vmatprep.subr.mxu0 %v940
      %1091 = vmatpush1.msra.mxu0 %v939
      %1092 = vmatprep.subr.mxu0 %v936
      %1093 = vmatpush1.msra.mxu0 %v935
      %1094 = vmatprep.subr.mxu0 %v932
      %1095 = vmatpush1.msra.mxu0 %v931
      %1096 = vmatprep.subr.mxu0 %v928
      %1097 = vmatpush1.msra.mxu0 %v927
      %1098 = vmatprep.subr.mxu0 %v924
      %1099 = vmatpush1.msra.mxu0 %v923
      %1100 = vmatprep.subr.mxu0 0.0
      %1101 = vmatpush2.msra.mxu0 0.0
      %1102 = vmatprep.subr.mxu0 0.0
      %1103 = vmatpush2.msra.mxu0 0.0
      %1104 = vmatprep.subr.mxu0 0.0
      %1105 = vmatpush2.msra.mxu0 0.0
      %1106 = vmatprep.subr.mxu0 0.0
      %1107 = vmatpush2.msra.mxu0 0.0
      %1108 = vmatprep.subr.mxu0 0.0
      %1109 = vmatpush2.msra.mxu0 0.0
      %1110 = vmatprep.subr.mxu0 0.0
      %1111 = vmatpush2.msra.mxu0 0.0
      %1112 = vmatprep.subr.mxu0 0.0
      %1113 = vmatpush2.msra.mxu0 0.0
      %1114 = vmatprep.subr.mxu0 0.0
      %1115 = vmatpush2.msra.mxu0 0.0
      %1116 = vmatprep.subr.mxu0 0.0
      %1117 = vmatpush2.msra.mxu0 0.0
      %1118 = vmatprep.subr.mxu0 0.0
      %1119 = vmatpush2.msra.mxu0 0.0
      %1120 = vmatprep.subr.mxu0 0.0
      %1121 = vmatpush2.msra.mxu0 0.0
      %1122 = vmatprep.subr.mxu0 0.0
      %1123 = vmatpush2.msra.mxu0 0.0
      %1124 = vmatprep.subr.mxu0 0.0
      %1125 = vmatpush2.msra.mxu0 0.0
      %1126 = vmatprep.subr.mxu0 0.0
      %1127 = vmatpush2.msra.mxu0 0.0
      %1128 = vmatprep.subr.mxu0 0.0
      %1129 = vmatpush2.msra.mxu0 0.0
      %1130 = vmatprep.subr.mxu0 0.0
      %1131 = vmatpush2.msra.mxu0 0.0
      %1132 = vmatprep.mubr.f32.mxu0 0.0
      %1133 = vmatmul.mubr.f32.gmra.mxu0 %v872
      %v1134 = vpop.f32.mrf.mxu0
      %v1135 = vadd.f32 0.0, %v1134
      %v1136 = vpop.f32.mrf.mxu0
      %v1137 = vadd.f32 0.0, %v1136
      %1138 = vmatprep.mubr.f32.mxu0 0.0
      %1139 = vmatmul.mubr.f32.gmra.mxu0 %v873
      %v1140 = vpop.f32.mrf.mxu0
      %v1141 = vadd.f32 0.0, %v1140
      %v1142 = vpop.f32.mrf.mxu0
      %v1143 = vadd.f32 0.0, %v1142
      %1144 = vmatprep.mubr.f32.mxu0 0.0
      %1145 = vmatmul.mubr.f32.gmra.mxu0 %v874
      %v1146 = vpop.f32.mrf.mxu0
      %v1147 = vadd.f32 0.0, %v1146
      %v1148 = vpop.f32.mrf.mxu0
      %v1149 = vadd.f32 0.0, %v1148
      %1150 = vdwg.mxu0
      %v1151 = vadd.f32 %v909, %v1052
      %v1152 = vadd.f32 %v910, %v1054
      %v1153 = vadd.f32 %v911, %v1135
      %v1154 = vadd.f32 %v912, %v1137
      %v1155 = vadd.f32 %v913, %v1058
      %v1156 = vadd.f32 %v914, %v1060
      %v1157 = vadd.f32 %v915, %v1141
      %v1158 = vadd.f32 %v916, %v1143
      %v1159 = vadd.f32 %v917, %v1064
      %v1160 = vadd.f32 %v918, %v1066
      %v1161 = vadd.f32 %v919, %v1147
      %v1162 = vadd.f32 %v920, %v1149
      %v1163 = vxor.u32 %v1151, 2147483648
      %v1164 = vxor.u32 %v1155, 2147483648
      %v1165 = vxor.u32 %v1159, 2147483648
      %v1166 = vmul.f32 %v1163, 1.442695
      %v1167 = vpow.pop %v1166
      %v1168 = vmul.f32 %v1164, 1.442695
      %v1169 = vpow.pop %v1168
      %v1170 = vmul.f32 %v1165, 1.442695
      %v1171 = vpow.pop %v1170
      %v1172 = vadd.f32 %v1167, 1.0
      %v1173 = vadd.f32 %v1169, 1.0
      %v1174 = vadd.f32 %v1171, 1.0
      %v1175 = vrcp.pop %v1172
      %v1176 = vmul.f32 1.0, %v1175
      %v1177 = vrcp.pop %v1173
      %v1178 = vmul.f32 1.0, %v1177
      %v1179 = vrcp.pop %v1174
      %v1180 = vmul.f32 1.0, %v1179
      %v1181 = vxor.u32 %v1152, 2147483648
      %v1182 = vxor.u32 %v1156, 2147483648
      %v1183 = vxor.u32 %v1160, 2147483648
      %v1184 = vmul.f32 %v1181, 1.442695
      %v1185 = vpow.pop %v1184
      %v1186 = vmul.f32 %v1182, 1.442695
      %v1187 = vpow.pop %v1186
      %v1188 = vmul.f32 %v1183, 1.442695
      %v1189 = vpow.pop %v1188
      %v1190 = vadd.f32 %v1185, 1.0
      %v1191 = vadd.f32 %v1187, 1.0
      %v1192 = vadd.f32 %v1189, 1.0
      %v1193 = vrcp.pop %v1190
      %v1194 = vmul.f32 1.0, %v1193
      %v1195 = vrcp.pop %v1191
      %v1196 = vmul.f32 1.0, %v1195
      %v1197 = vrcp.pop %v1192
      %v1198 = vmul.f32 1.0, %v1197
      %v1199 = vtanh.pop %v1153
      %v1200 = vtanh.pop %v1157
      %v1201 = vtanh.pop %v1161
      %v1202 = vxor.u32 %v1154, 2147483648
      %v1203 = vxor.u32 %v1158, 2147483648
      %v1204 = vxor.u32 %v1162, 2147483648
      %v1205 = vmul.f32 %v1202, 1.442695
      %v1206 = vpow.pop %v1205
      %v1207 = vmul.f32 %v1203, 1.442695
      %v1208 = vpow.pop %v1207
      %v1209 = vmul.f32 %v1204, 1.442695
      %v1210 = vpow.pop %v1209
      %v1211 = vadd.f32 %v1206, 1.0
      %v1212 = vadd.f32 %v1208, 1.0
      %v1213 = vadd.f32 %v1210, 1.0
      %v1214 = vrcp.pop %v1211
      %v1215 = vmul.f32 1.0, %v1214
      %v1216 = vrcp.pop %v1212
      %v1217 = vmul.f32 1.0, %v1216
      %v1218 = vrcp.pop %v1213
      %v1219 = vmul.f32 1.0, %v1218
      %v1220 = vmul.f32 %v1194, %v875
      %v1221 = vmul.f32 %v1196, %v876
      %v1222 = vmul.f32 %v1198, %v877
      %v1223 = vmul.f32 %v1176, %v1199
      %v1224 = vmul.f32 %v1178, %v1200
      %v1225 = vmul.f32 %v1180, %v1201
      %v1226 = vadd.f32 %v1220, %v1223
      %v1227 = vadd.f32 %v1221, %v1224
      %v1228 = vadd.f32 %v1222, %v1225
      %v1229 = vtanh.pop %v1226
      %v1230 = vtanh.pop %v1227
      %v1231 = vtanh.pop %v1228
      %v1232 = vmul.f32 %v1215, %v1229
      %v1233 = vmul.f32 %v1217, %v1230
      %v1234 = vmul.f32 %v1219, %v1231
      %v1235 = vsel %vm900, %v1232, %v872
      %v1236 = vsel %vm901, %v1233, %v873
      %v1237 = vsel %vm902, %v1234, %v874
      %v1238 = vsel %vm900, %v1226, %v875
      %v1239 = vsel %vm901, %v1227, %v876
      %v1240 = vsel %vm902, %v1228, %v877
      %v1241 = vld [vmem:[#allocation8] sm:$0xff]
      %v1242 = vld [vmem:[#allocation8 + $0x8] sm:$0xff]
      %v1243 = vld [vmem:[#allocation8 + $0x10] sm:$0xff]
      %v1244 = vld [vmem:[#allocation8 + $0x18] sm:$0xff]
      %v1245 = vld [vmem:[#allocation8 + $0x20] sm:$0xff]
      %v1246 = vld [vmem:[#allocation8 + $0x28] sm:$0xff]
      %v1247 = vld [vmem:[#allocation8 + $0x30] sm:$0xff]
      %v1248 = vld [vmem:[#allocation8 + $0x38] sm:$0xff]
      %v1249 = vld [vmem:[#allocation8 + $0x40] sm:$0xff]
      %v1250 = vld [vmem:[#allocation8 + $0x48] sm:$0xff]
      %v1251 = vld [vmem:[#allocation8 + $0x50] sm:$0xff]
      %v1252 = vld [vmem:[#allocation8 + $0x58] sm:$0xff]
      %v1253 = vld [vmem:[#allocation8 + $0x60] sm:$0xff]
      %v1254 = vld [vmem:[#allocation8 + $0x68] sm:$0xff]
      %v1255 = vld [vmem:[#allocation8 + $0x70] sm:$0xff]
      %v1256 = vld [vmem:[#allocation8 + $0x78] sm:$0xff]
      %v1257 = vld [vmem:[#allocation8 + $0x80] sm:$0xff]
      %v1258 = vld [vmem:[#allocation8 + $0x88] sm:$0xff]
      %v1259 = vld [vmem:[#allocation8 + $0x90] sm:$0xff]
      %v1260 = vld [vmem:[#allocation8 + $0x98] sm:$0xff]
      %v1261 = vld [vmem:[#allocation8 + $0xa0] sm:$0xff]
      %v1262 = vld [vmem:[#allocation8 + $0xa8] sm:$0xff]
      %v1263 = vld [vmem:[#allocation8 + $0xb0] sm:$0xff]
      %v1264 = vld [vmem:[#allocation8 + $0xb8] sm:$0xff]
      %v1265 = vld [vmem:[#allocation8 + $0xc0] sm:$0xff]
      %v1266 = vld [vmem:[#allocation8 + $0xc8] sm:$0xff]
      %v1267 = vld [vmem:[#allocation8 + $0xd0] sm:$0xff]
      %v1268 = vld [vmem:[#allocation8 + $0xd8] sm:$0xff]
      %v1269 = vld [vmem:[#allocation8 + $0xe0] sm:$0xff]
      %v1270 = vld [vmem:[#allocation8 + $0xe8] sm:$0xff]
      %v1271 = vld [vmem:[#allocation8 + $0xf0] sm:$0xff]
      %v1272 = vld [vmem:[#allocation8 + $0xf8] sm:$0xff]
      %v1273 = vld [vmem:[#allocation8 + $0x100] sm:$0xff]
      %v1274 = vld [vmem:[#allocation8 + $0x108] sm:$0xff]
      %v1275 = vld [vmem:[#allocation8 + $0x110] sm:$0xff]
      %v1276 = vld [vmem:[#allocation8 + $0x118] sm:$0xff]
      %v1277 = vld [vmem:[#allocation8 + $0x120] sm:$0xff]
      %v1278 = vld [vmem:[#allocation8 + $0x128] sm:$0xff]
      %v1279 = vld [vmem:[#allocation8 + $0x130] sm:$0xff]
      %v1280 = vld [vmem:[#allocation8 + $0x138] sm:$0xff]
      %v1281 = vld [vmem:[#allocation8 + $0x140] sm:$0xff]
      %v1282 = vld [vmem:[#allocation8 + $0x148] sm:$0xff]
      %v1283 = vld [vmem:[#allocation8 + $0x150] sm:$0xff]
      %v1284 = vld [vmem:[#allocation8 + $0x158] sm:$0xff]
      %v1285 = vld [vmem:[#allocation8 + $0x160] sm:$0xff]
      %v1286 = vld [vmem:[#allocation8 + $0x168] sm:$0xff]
      %v1287 = vld [vmem:[#allocation8 + $0x170] sm:$0xff]
      %v1288 = vld [vmem:[#allocation8 + $0x178] sm:$0xff]
      %v1289 = vld [vmem:[#allocation8 + $0x180] sm:$0xff]
      %v1290 = vld [vmem:[#allocation8 + $0x188] sm:$0xff]
      %v1291 = vld [vmem:[#allocation8 + $0x190] sm:$0xff]
      %v1292 = vld [vmem:[#allocation8 + $0x198] sm:$0xff]
      %v1293 = vld [vmem:[#allocation8 + $0x1a0] sm:$0xff]
      %v1294 = vld [vmem:[#allocation8 + $0x1a8] sm:$0xff]
      %v1295 = vld [vmem:[#allocation8 + $0x1b0] sm:$0xff]
      %v1296 = vld [vmem:[#allocation8 + $0x1b8] sm:$0xff]
      %v1297 = vld [vmem:[#allocation8 + $0x1c0] sm:$0xff]
      %v1298 = vld [vmem:[#allocation8 + $0x1c8] sm:$0xff]
      %v1299 = vld [vmem:[#allocation8 + $0x1d0] sm:$0xff]
      %v1300 = vld [vmem:[#allocation8 + $0x1d8] sm:$0xff]
      %v1301 = vld [vmem:[#allocation8 + $0x1e0] sm:$0xff]
      %v1302 = vld [vmem:[#allocation8 + $0x1e8] sm:$0xff]
      %v1303 = vld [vmem:[#allocation8 + $0x1f0] sm:$0xff]
      %v1304 = vld [vmem:[#allocation8 + $0x1f8] sm:$0xff]
      %v1305 = vld [vmem:[#allocation10] sm:$0xff]
      %v1306 = vld [vmem:[#allocation10 + $0x8] sm:$0xff]
      %v1307 = vld [vmem:[#allocation10 + $0x10] sm:$0xff]
      %v1308 = vld [vmem:[#allocation10 + $0x18] sm:$0xff]
      %v1309 = vld [vmem:[#allocation10 + $0x20] sm:$0xff]
      %v1310 = vld [vmem:[#allocation10 + $0x28] sm:$0xff]
      %v1311 = vld [vmem:[#allocation10 + $0x30] sm:$0xff]
      %v1312 = vld [vmem:[#allocation10 + $0x38] sm:$0xff]
      %v1313 = vld [vmem:[#allocation10 + $0x40] sm:$0xff]
      %v1314 = vld [vmem:[#allocation10 + $0x48] sm:$0xff]
      %v1315 = vld [vmem:[#allocation10 + $0x50] sm:$0xff]
      %v1316 = vld [vmem:[#allocation10 + $0x58] sm:$0xff]
      %v1317 = vld [vmem:[#allocation10 + $0x60] sm:$0xff]
      %v1318 = vld [vmem:[#allocation10 + $0x68] sm:$0xff]
      %v1319 = vld [vmem:[#allocation10 + $0x70] sm:$0xff]
      %v1320 = vld [vmem:[#allocation10 + $0x78] sm:$0xff]
      %v1321 = vld [vmem:[#allocation10 + $0x80] sm:$0xff]
      %v1322 = vld [vmem:[#allocation10 + $0x88] sm:$0xff]
      %v1323 = vld [vmem:[#allocation10 + $0x90] sm:$0xff]
      %v1324 = vld [vmem:[#allocation10 + $0x98] sm:$0xff]
      %v1325 = vld [vmem:[#allocation10 + $0xa0] sm:$0xff]
      %v1326 = vld [vmem:[#allocation10 + $0xa8] sm:$0xff]
      %v1327 = vld [vmem:[#allocation10 + $0xb0] sm:$0xff]
      %v1328 = vld [vmem:[#allocation10 + $0xb8] sm:$0xff]
      %v1329 = vld [vmem:[#allocation10 + $0xc0] sm:$0xff]
      %v1330 = vld [vmem:[#allocation10 + $0xc8] sm:$0xff]
      %v1331 = vld [vmem:[#allocation10 + $0xd0] sm:$0xff]
      %v1332 = vld [vmem:[#allocation10 + $0xd8] sm:$0xff]
      %v1333 = vld [vmem:[#allocation10 + $0xe0] sm:$0xff]
      %v1334 = vld [vmem:[#allocation10 + $0xe8] sm:$0xff]
      %v1335 = vld [vmem:[#allocation10 + $0xf0] sm:$0xff]
      %v1336 = vld [vmem:[#allocation10 + $0xf8] sm:$0xff]
      %v1337 = vld [vmem:[#allocation10 + $0x100] sm:$0xff]
      %v1338 = vld [vmem:[#allocation10 + $0x108] sm:$0xff]
      %v1339 = vld [vmem:[#allocation10 + $0x110] sm:$0xff]
      %v1340 = vld [vmem:[#allocation10 + $0x118] sm:$0xff]
      %v1341 = vld [vmem:[#allocation10 + $0x120] sm:$0xff]
      %v1342 = vld [vmem:[#allocation10 + $0x128] sm:$0xff]
      %v1343 = vld [vmem:[#allocation10 + $0x130] sm:$0xff]
      %v1344 = vld [vmem:[#allocation10 + $0x138] sm:$0xff]
      %v1345 = vld [vmem:[#allocation10 + $0x140] sm:$0xff]
      %v1346 = vld [vmem:[#allocation10 + $0x148] sm:$0xff]
      %v1347 = vld [vmem:[#allocation10 + $0x150] sm:$0xff]
      %v1348 = vld [vmem:[#allocation10 + $0x158] sm:$0xff]
      %v1349 = vld [vmem:[#allocation10 + $0x160] sm:$0xff]
      %v1350 = vld [vmem:[#allocation10 + $0x168] sm:$0xff]
      %v1351 = vld [vmem:[#allocation10 + $0x170] sm:$0xff]
      %v1352 = vld [vmem:[#allocation10 + $0x178] sm:$0xff]
      %v1353 = vld [vmem:[#allocation10 + $0x180] sm:$0xff]
      %v1354 = vld [vmem:[#allocation10 + $0x188] sm:$0xff]
      %v1355 = vld [vmem:[#allocation10 + $0x190] sm:$0xff]
      %v1356 = vld [vmem:[#allocation10 + $0x198] sm:$0xff]
      %v1357 = vld [vmem:[#allocation10 + $0x1a0] sm:$0xff]
      %v1358 = vld [vmem:[#allocation10 + $0x1a8] sm:$0xff]
      %v1359 = vld [vmem:[#allocation10 + $0x1b0] sm:$0xff]
      %v1360 = vld [vmem:[#allocation10 + $0x1b8] sm:$0xff]
      %v1361 = vld [vmem:[#allocation10 + $0x1c0] sm:$0xff]
      %v1362 = vld [vmem:[#allocation10 + $0x1c8] sm:$0xff]
      %v1363 = vld [vmem:[#allocation10 + $0x1d0] sm:$0xff]
      %v1364 = vld [vmem:[#allocation10 + $0x1d8] sm:$0xff]
      %v1365 = vld [vmem:[#allocation10 + $0x1e0] sm:$0xff]
      %v1366 = vld [vmem:[#allocation10 + $0x1e8] sm:$0xff]
      %v1367 = vld [vmem:[#allocation10 + $0x1f0] sm:$0xff]
      %v1368 = vld [vmem:[#allocation10 + $0x1f8] sm:$0xff]
      %1369 = vmatprep.subr.mxu0 %v1366
      %1370 = vmatpush1.msra.mxu0 %v1365
      %1371 = vmatprep.subr.mxu0 %v1362
      %1372 = vmatpush1.msra.mxu0 %v1361
      %1373 = vmatprep.subr.mxu0 %v1358
      %1374 = vmatpush1.msra.mxu0 %v1357
      %1375 = vmatprep.subr.mxu0 %v1354
      %1376 = vmatpush1.msra.mxu0 %v1353
      %1377 = vmatprep.subr.mxu0 %v1350
      %1378 = vmatpush1.msra.mxu0 %v1349
      %1379 = vmatprep.subr.mxu0 %v1346
      %1380 = vmatpush1.msra.mxu0 %v1345
      %1381 = vmatprep.subr.mxu0 %v1342
      %1382 = vmatpush1.msra.mxu0 %v1341
      %1383 = vmatprep.subr.mxu0 %v1338
      %1384 = vmatpush1.msra.mxu0 %v1337
      %1385 = vmatprep.subr.mxu0 %v1334
      %1386 = vmatpush1.msra.mxu0 %v1333
      %1387 = vmatprep.subr.mxu0 %v1330
      %1388 = vmatpush1.msra.mxu0 %v1329
      %1389 = vmatprep.subr.mxu0 %v1326
      %1390 = vmatpush1.msra.mxu0 %v1325
      %1391 = vmatprep.subr.mxu0 %v1322
      %1392 = vmatpush1.msra.mxu0 %v1321
      %1393 = vmatprep.subr.mxu0 %v1318
      %1394 = vmatpush1.msra.mxu0 %v1317
      %1395 = vmatprep.subr.mxu0 %v1314
      %1396 = vmatpush1.msra.mxu0 %v1313
      %1397 = vmatprep.subr.mxu0 %v1310
      %1398 = vmatpush1.msra.mxu0 %v1309
      %1399 = vmatprep.subr.mxu0 %v1306
      %1400 = vmatpush1.msra.mxu0 %v1305
      %1401 = vmatprep.subr.mxu0 0.0
      %1402 = vmatpush2.msra.mxu0 0.0
      %1403 = vmatprep.subr.mxu0 0.0
      %1404 = vmatpush2.msra.mxu0 0.0
      %1405 = vmatprep.subr.mxu0 0.0
      %1406 = vmatpush2.msra.mxu0 0.0
      %1407 = vmatprep.subr.mxu0 0.0
      %1408 = vmatpush2.msra.mxu0 0.0
      %1409 = vmatprep.subr.mxu0 0.0
      %1410 = vmatpush2.msra.mxu0 0.0
      %1411 = vmatprep.subr.mxu0 0.0
      %1412 = vmatpush2.msra.mxu0 0.0
      %1413 = vmatprep.subr.mxu0 0.0
      %1414 = vmatpush2.msra.mxu0 0.0
      %1415 = vmatprep.subr.mxu0 0.0
      %1416 = vmatpush2.msra.mxu0 0.0
      %1417 = vmatprep.subr.mxu0 0.0
      %1418 = vmatpush2.msra.mxu0 0.0
      %1419 = vmatprep.subr.mxu0 0.0
      %1420 = vmatpush2.msra.mxu0 0.0
      %1421 = vmatprep.subr.mxu0 0.0
      %1422 = vmatpush2.msra.mxu0 0.0
      %1423 = vmatprep.subr.mxu0 0.0
      %1424 = vmatpush2.msra.mxu0 0.0
      %1425 = vmatprep.subr.mxu0 0.0
      %1426 = vmatpush2.msra.mxu0 0.0
      %1427 = vmatprep.subr.mxu0 0.0
      %1428 = vmatpush2.msra.mxu0 0.0
      %1429 = vmatprep.subr.mxu0 0.0
      %1430 = vmatpush2.msra.mxu0 0.0
      %1431 = vmatprep.subr.mxu0 0.0
      %1432 = vmatpush2.msra.mxu0 0.0
      %1433 = vmatprep.mubr.f32.mxu0 0.0
      %1434 = vmatmul.mubr.f32.gmra.mxu0 %v878
      %v1435 = vpop.f32.mrf.mxu0
      %v1436 = vadd.f32 0.0, %v1435
      %v1437 = vpop.f32.mrf.mxu0
      %v1438 = vadd.f32 0.0, %v1437
      %1439 = vmatprep.mubr.f32.mxu0 0.0
      %1440 = vmatmul.mubr.f32.gmra.mxu0 %v879
      %v1441 = vpop.f32.mrf.mxu0
      %v1442 = vadd.f32 0.0, %v1441
      %v1443 = vpop.f32.mrf.mxu0
      %v1444 = vadd.f32 0.0, %v1443
      %1445 = vmatprep.mubr.f32.mxu0 0.0
      %1446 = vmatmul.mubr.f32.gmra.mxu0 %v880
      %v1447 = vpop.f32.mrf.mxu0
      %v1448 = vadd.f32 0.0, %v1447
      %v1449 = vpop.f32.mrf.mxu0
      %v1450 = vadd.f32 0.0, %v1449
      %1451 = vdwg.mxu0
      %1452 = vmatprep.subr.mxu0 %v1368
      %1453 = vmatpush1.msra.mxu0 %v1367
      %1454 = vmatprep.subr.mxu0 %v1364
      %1455 = vmatpush1.msra.mxu0 %v1363
      %1456 = vmatprep.subr.mxu0 %v1360
      %1457 = vmatpush1.msra.mxu0 %v1359
      %1458 = vmatprep.subr.mxu0 %v1356
      %1459 = vmatpush1.msra.mxu0 %v1355
      %1460 = vmatprep.subr.mxu0 %v1352
      %1461 = vmatpush1.msra.mxu0 %v1351
      %1462 = vmatprep.subr.mxu0 %v1348
      %1463 = vmatpush1.msra.mxu0 %v1347
      %1464 = vmatprep.subr.mxu0 %v1344
      %1465 = vmatpush1.msra.mxu0 %v1343
      %1466 = vmatprep.subr.mxu0 %v1340
      %1467 = vmatpush1.msra.mxu0 %v1339
      %1468 = vmatprep.subr.mxu0 %v1336
      %1469 = vmatpush1.msra.mxu0 %v1335
      %1470 = vmatprep.subr.mxu0 %v1332
      %1471 = vmatpush1.msra.mxu0 %v1331
      %1472 = vmatprep.subr.mxu0 %v1328
      %1473 = vmatpush1.msra.mxu0 %v1327
      %1474 = vmatprep.subr.mxu0 %v1324
      %1475 = vmatpush1.msra.mxu0 %v1323
      %1476 = vmatprep.subr.mxu0 %v1320
      %1477 = vmatpush1.msra.mxu0 %v1319
      %1478 = vmatprep.subr.mxu0 %v1316
      %1479 = vmatpush1.msra.mxu0 %v1315
      %1480 = vmatprep.subr.mxu0 %v1312
      %1481 = vmatpush1.msra.mxu0 %v1311
      %1482 = vmatprep.subr.mxu0 %v1308
      %1483 = vmatpush1.msra.mxu0 %v1307
      %1484 = vmatprep.subr.mxu0 0.0
      %1485 = vmatpush2.msra.mxu0 0.0
      %1486 = vmatprep.subr.mxu0 0.0
      %1487 = vmatpush2.msra.mxu0 0.0
      %1488 = vmatprep.subr.mxu0 0.0
      %1489 = vmatpush2.msra.mxu0 0.0
      %1490 = vmatprep.subr.mxu0 0.0
      %1491 = vmatpush2.msra.mxu0 0.0
      %1492 = vmatprep.subr.mxu0 0.0
      %1493 = vmatpush2.msra.mxu0 0.0
      %1494 = vmatprep.subr.mxu0 0.0
      %1495 = vmatpush2.msra.mxu0 0.0
      %1496 = vmatprep.subr.mxu0 0.0
      %1497 = vmatpush2.msra.mxu0 0.0
      %1498 = vmatprep.subr.mxu0 0.0
      %1499 = vmatpush2.msra.mxu0 0.0
      %1500 = vmatprep.subr.mxu0 0.0
      %1501 = vmatpush2.msra.mxu0 0.0
      %1502 = vmatprep.subr.mxu0 0.0
      %1503 = vmatpush2.msra.mxu0 0.0
      %1504 = vmatprep.subr.mxu0 0.0
      %1505 = vmatpush2.msra.mxu0 0.0
      %1506 = vmatprep.subr.mxu0 0.0
      %1507 = vmatpush2.msra.mxu0 0.0
      %1508 = vmatprep.subr.mxu0 0.0
      %1509 = vmatpush2.msra.mxu0 0.0
      %1510 = vmatprep.subr.mxu0 0.0
      %1511 = vmatpush2.msra.mxu0 0.0
      %1512 = vmatprep.subr.mxu0 0.0
      %1513 = vmatpush2.msra.mxu0 0.0
      %1514 = vmatprep.subr.mxu0 0.0
      %1515 = vmatpush2.msra.mxu0 0.0
      %1516 = vmatprep.mubr.f32.mxu0 0.0
      %1517 = vmatmul.mubr.f32.gmra.mxu0 %v878
      %v1518 = vpop.f32.mrf.mxu0
      %v1519 = vadd.f32 0.0, %v1518
      %v1520 = vpop.f32.mrf.mxu0
      %v1521 = vadd.f32 0.0, %v1520
      %1522 = vmatprep.mubr.f32.mxu0 0.0
      %1523 = vmatmul.mubr.f32.gmra.mxu0 %v879
      %v1524 = vpop.f32.mrf.mxu0
      %v1525 = vadd.f32 0.0, %v1524
      %v1526 = vpop.f32.mrf.mxu0
      %v1527 = vadd.f32 0.0, %v1526
      %1528 = vmatprep.mubr.f32.mxu0 0.0
      %1529 = vmatmul.mubr.f32.gmra.mxu0 %v880
      %v1530 = vpop.f32.mrf.mxu0
      %v1531 = vadd.f32 0.0, %v1530
      %v1532 = vpop.f32.mrf.mxu0
      %v1533 = vadd.f32 0.0, %v1532
      %1534 = vdwg.mxu0
      %1535 = vmatprep.subr.mxu0 %v1302
      %1536 = vmatpush1.msra.mxu0 %v1301
      %1537 = vmatprep.subr.mxu0 %v1298
      %1538 = vmatpush1.msra.mxu0 %v1297
      %1539 = vmatprep.subr.mxu0 %v1294
      %1540 = vmatpush1.msra.mxu0 %v1293
      %1541 = vmatprep.subr.mxu0 %v1290
      %1542 = vmatpush1.msra.mxu0 %v1289
      %1543 = vmatprep.subr.mxu0 %v1286
      %1544 = vmatpush1.msra.mxu0 %v1285
      %1545 = vmatprep.subr.mxu0 %v1282
      %1546 = vmatpush1.msra.mxu0 %v1281
      %1547 = vmatprep.subr.mxu0 %v1278
      %1548 = vmatpush1.msra.mxu0 %v1277
      %1549 = vmatprep.subr.mxu0 %v1274
      %1550 = vmatpush1.msra.mxu0 %v1273
      %1551 = vmatprep.subr.mxu0 %v1270
      %1552 = vmatpush1.msra.mxu0 %v1269
      %1553 = vmatprep.subr.mxu0 %v1266
      %1554 = vmatpush1.msra.mxu0 %v1265
      %1555 = vmatprep.subr.mxu0 %v1262
      %1556 = vmatpush1.msra.mxu0 %v1261
      %1557 = vmatprep.subr.mxu0 %v1258
      %1558 = vmatpush1.msra.mxu0 %v1257
      %1559 = vmatprep.subr.mxu0 %v1254
      %1560 = vmatpush1.msra.mxu0 %v1253
      %1561 = vmatprep.subr.mxu0 %v1250
      %1562 = vmatpush1.msra.mxu0 %v1249
      %1563 = vmatprep.subr.mxu0 %v1246
      %1564 = vmatpush1.msra.mxu0 %v1245
      %1565 = vmatprep.subr.mxu0 %v1242
      %1566 = vmatpush1.msra.mxu0 %v1241
      %1567 = vmatprep.subr.mxu0 0.0
      %1568 = vmatpush2.msra.mxu0 0.0
      %1569 = vmatprep.subr.mxu0 0.0
      %1570 = vmatpush2.msra.mxu0 0.0
      %1571 = vmatprep.subr.mxu0 0.0
      %1572 = vmatpush2.msra.mxu0 0.0
      %1573 = vmatprep.subr.mxu0 0.0
      %1574 = vmatpush2.msra.mxu0 0.0
      %1575 = vmatprep.subr.mxu0 0.0
      %1576 = vmatpush2.msra.mxu0 0.0
      %1577 = vmatprep.subr.mxu0 0.0
      %1578 = vmatpush2.msra.mxu0 0.0
      %1579 = vmatprep.subr.mxu0 0.0
      %1580 = vmatpush2.msra.mxu0 0.0
      %1581 = vmatprep.subr.mxu0 0.0
      %1582 = vmatpush2.msra.mxu0 0.0
      %1583 = vmatprep.subr.mxu0 0.0
      %1584 = vmatpush2.msra.mxu0 0.0
      %1585 = vmatprep.subr.mxu0 0.0
      %1586 = vmatpush2.msra.mxu0 0.0
      %1587 = vmatprep.subr.mxu0 0.0
      %1588 = vmatpush2.msra.mxu0 0.0
      %1589 = vmatprep.subr.mxu0 0.0
      %1590 = vmatpush2.msra.mxu0 0.0
      %1591 = vmatprep.subr.mxu0 0.0
      %1592 = vmatpush2.msra.mxu0 0.0
      %1593 = vmatprep.subr.mxu0 0.0
      %1594 = vmatpush2.msra.mxu0 0.0
      %1595 = vmatprep.subr.mxu0 0.0
      %1596 = vmatpush2.msra.mxu0 0.0
      %1597 = vmatprep.subr.mxu0 0.0
      %1598 = vmatpush2.msra.mxu0 0.0
      %1599 = vmatprep.mubr.f32.mxu0 0.0
      %1600 = vmatmul.mubr.f32.gmra.mxu0 %v1235
      %v1601 = vpop.f32.mrf.mxu0
      %v1602 = vadd.f32 %v1436, %v1601
      %v1603 = vpop.f32.mrf.mxu0
      %v1604 = vadd.f32 %v1438, %v1603
      %1605 = vmatprep.mubr.f32.mxu0 0.0
      %1606 = vmatmul.mubr.f32.gmra.mxu0 %v1236
      %v1607 = vpop.f32.mrf.mxu0
      %v1608 = vadd.f32 %v1442, %v1607
      %v1609 = vpop.f32.mrf.mxu0
      %v1610 = vadd.f32 %v1444, %v1609
      %1611 = vmatprep.mubr.f32.mxu0 0.0
      %1612 = vmatmul.mubr.f32.gmra.mxu0 %v1237
      %v1613 = vpop.f32.mrf.mxu0
      %v1614 = vadd.f32 %v1448, %v1613
      %v1615 = vpop.f32.mrf.mxu0
      %v1616 = vadd.f32 %v1450, %v1615
      %1617 = vdwg.mxu0
      %1618 = vmatprep.subr.mxu0 %v1304
      %1619 = vmatpush1.msra.mxu0 %v1303
      %1620 = vmatprep.subr.mxu0 %v1300
      %1621 = vmatpush1.msra.mxu0 %v1299
      %1622 = vmatprep.subr.mxu0 %v1296
      %1623 = vmatpush1.msra.mxu0 %v1295
      %1624 = vmatprep.subr.mxu0 %v1292
      %1625 = vmatpush1.msra.mxu0 %v1291
      %1626 = vmatprep.subr.mxu0 %v1288
      %1627 = vmatpush1.msra.mxu0 %v1287
      %1628 = vmatprep.subr.mxu0 %v1284
      %1629 = vmatpush1.msra.mxu0 %v1283
      %1630 = vmatprep.subr.mxu0 %v1280
      %1631 = vmatpush1.msra.mxu0 %v1279
      %1632 = vmatprep.subr.mxu0 %v1276
      %1633 = vmatpush1.msra.mxu0 %v1275
      %1634 = vmatprep.subr.mxu0 %v1272
      %1635 = vmatpush1.msra.mxu0 %v1271
      %1636 = vmatprep.subr.mxu0 %v1268
      %1637 = vmatpush1.msra.mxu0 %v1267
      %1638 = vmatprep.subr.mxu0 %v1264
      %1639 = vmatpush1.msra.mxu0 %v1263
      %1640 = vmatprep.subr.mxu0 %v1260
      %1641 = vmatpush1.msra.mxu0 %v1259
      %1642 = vmatprep.subr.mxu0 %v1256
      %1643 = vmatpush1.msra.mxu0 %v1255
      %1644 = vmatprep.subr.mxu0 %v1252
      %1645 = vmatpush1.msra.mxu0 %v1251
      %1646 = vmatprep.subr.mxu0 %v1248
      %1647 = vmatpush1.msra.mxu0 %v1247
      %1648 = vmatprep.subr.mxu0 %v1244
      %1649 = vmatpush1.msra.mxu0 %v1243
      %1650 = vmatprep.subr.mxu0 0.0
      %1651 = vmatpush2.msra.mxu0 0.0
      %1652 = vmatprep.subr.mxu0 0.0
      %1653 = vmatpush2.msra.mxu0 0.0
      %1654 = vmatprep.subr.mxu0 0.0
      %1655 = vmatpush2.msra.mxu0 0.0
      %1656 = vmatprep.subr.mxu0 0.0
      %1657 = vmatpush2.msra.mxu0 0.0
      %1658 = vmatprep.subr.mxu0 0.0
      %1659 = vmatpush2.msra.mxu0 0.0
      %1660 = vmatprep.subr.mxu0 0.0
      %1661 = vmatpush2.msra.mxu0 0.0
      %1662 = vmatprep.subr.mxu0 0.0
      %1663 = vmatpush2.msra.mxu0 0.0
      %1664 = vmatprep.subr.mxu0 0.0
      %1665 = vmatpush2.msra.mxu0 0.0
      %1666 = vmatprep.subr.mxu0 0.0
      %1667 = vmatpush2.msra.mxu0 0.0
      %1668 = vmatprep.subr.mxu0 0.0
      %1669 = vmatpush2.msra.mxu0 0.0
      %1670 = vmatprep.subr.mxu0 0.0
      %1671 = vmatpush2.msra.mxu0 0.0
      %1672 = vmatprep.subr.mxu0 0.0
      %1673 = vmatpush2.msra.mxu0 0.0
      %1674 = vmatprep.subr.mxu0 0.0
      %1675 = vmatpush2.msra.mxu0 0.0
      %1676 = vmatprep.subr.mxu0 0.0
      %1677 = vmatpush2.msra.mxu0 0.0
      %1678 = vmatprep.subr.mxu0 0.0
      %1679 = vmatpush2.msra.mxu0 0.0
      %1680 = vmatprep.subr.mxu0 0.0
      %1681 = vmatpush2.msra.mxu0 0.0
      %1682 = vmatprep.mubr.f32.mxu0 0.0
      %1683 = vmatmul.mubr.f32.gmra.mxu0 %v1235
      %v1684 = vpop.f32.mrf.mxu0
      %v1685 = vadd.f32 %v1519, %v1684
      %v1686 = vpop.f32.mrf.mxu0
      %v1687 = vadd.f32 %v1521, %v1686
      %1688 = vmatprep.mubr.f32.mxu0 0.0
      %1689 = vmatmul.mubr.f32.gmra.mxu0 %v1236
      %v1690 = vpop.f32.mrf.mxu0
      %v1691 = vadd.f32 %v1525, %v1690
      %v1692 = vpop.f32.mrf.mxu0
      %v1693 = vadd.f32 %v1527, %v1692
      %1694 = vmatprep.mubr.f32.mxu0 0.0
      %1695 = vmatmul.mubr.f32.gmra.mxu0 %v1237
      %v1696 = vpop.f32.mrf.mxu0
      %v1697 = vadd.f32 %v1531, %v1696
      %v1698 = vpop.f32.mrf.mxu0
      %v1699 = vadd.f32 %v1533, %v1698
      %1700 = vdwg.mxu0
      %v1701 = vadd.f32 %v1602, %v848
      %v1702 = vadd.f32 %v1604, %v852
      %v1703 = vadd.f32 %v1685, %v856
      %v1704 = vadd.f32 %v1687, %v860
      %v1705 = vadd.f32 %v1608, %v848
      %v1706 = vadd.f32 %v1610, %v852
      %v1707 = vadd.f32 %v1691, %v856
      %v1708 = vadd.f32 %v1693, %v860
      %v1709 = vadd.f32 %v1614, %v848
      %v1710 = vadd.f32 %v1616, %v852
      %v1711 = vadd.f32 %v1697, %v856
      %v1712 = vadd.f32 %v1699, %v860
      %v1713 = vxor.u32 %v1701, 2147483648
      %v1714 = vxor.u32 %v1705, 2147483648
      %v1715 = vxor.u32 %v1709, 2147483648
      %v1716 = vmul.f32 %v1713, 1.442695
      %v1717 = vpow.pop %v1716
      %v1718 = vmul.f32 %v1714, 1.442695
      %v1719 = vpow.pop %v1718
      %v1720 = vmul.f32 %v1715, 1.442695
      %v1721 = vpow.pop %v1720
      %v1722 = vadd.f32 %v1717, 1.0
      %v1723 = vadd.f32 %v1719, 1.0
      %v1724 = vadd.f32 %v1721, 1.0
      %v1725 = vrcp.pop %v1722
      %v1726 = vmul.f32 1.0, %v1725
      %v1727 = vrcp.pop %v1723
      %v1728 = vmul.f32 1.0, %v1727
      %v1729 = vrcp.pop %v1724
      %v1730 = vmul.f32 1.0, %v1729
      %v1731 = vxor.u32 %v1702, 2147483648
      %v1732 = vxor.u32 %v1706, 2147483648
      %v1733 = vxor.u32 %v1710, 2147483648
      %v1734 = vmul.f32 %v1731, 1.442695
      %v1735 = vpow.pop %v1734
      %v1736 = vmul.f32 %v1732, 1.442695
      %v1737 = vpow.pop %v1736
      %v1738 = vmul.f32 %v1733, 1.442695
      %v1739 = vpow.pop %v1738
      %v1740 = vadd.f32 %v1735, 1.0
      %v1741 = vadd.f32 %v1737, 1.0
      %v1742 = vadd.f32 %v1739, 1.0
      %v1743 = vrcp.pop %v1740
      %v1744 = vmul.f32 1.0, %v1743
      %v1745 = vrcp.pop %v1741
      %v1746 = vmul.f32 1.0, %v1745
      %v1747 = vrcp.pop %v1742
      %v1748 = vmul.f32 1.0, %v1747
      %v1749 = vtanh.pop %v1703
      %v1750 = vtanh.pop %v1707
      %v1751 = vtanh.pop %v1711
      %v1752 = vxor.u32 %v1704, 2147483648
      %v1753 = vxor.u32 %v1708, 2147483648
      %v1754 = vxor.u32 %v1712, 2147483648
      %v1755 = vmul.f32 %v1752, 1.442695
      %v1756 = vpow.pop %v1755
      %v1757 = vmul.f32 %v1753, 1.442695
      %v1758 = vpow.pop %v1757
      %v1759 = vmul.f32 %v1754, 1.442695
      %v1760 = vpow.pop %v1759
      %v1761 = vadd.f32 %v1756, 1.0
      %v1762 = vadd.f32 %v1758, 1.0
      %v1763 = vadd.f32 %v1760, 1.0
      %v1764 = vrcp.pop %v1761
      %v1765 = vmul.f32 1.0, %v1764
      %v1766 = vrcp.pop %v1762
      %v1767 = vmul.f32 1.0, %v1766
      %v1768 = vrcp.pop %v1763
      %v1769 = vmul.f32 1.0, %v1768
      %v1770 = vmul.f32 %v1744, %v881
      %v1771 = vmul.f32 %v1746, %v882
      %v1772 = vmul.f32 %v1748, %v883
      %v1773 = vmul.f32 %v1726, %v1749
      %v1774 = vmul.f32 %v1728, %v1750
      %v1775 = vmul.f32 %v1730, %v1751
      %v1776 = vadd.f32 %v1770, %v1773
      %v1777 = vadd.f32 %v1771, %v1774
      %v1778 = vadd.f32 %v1772, %v1775
      %v1779 = vtanh.pop %v1776
      %v1780 = vtanh.pop %v1777
      %v1781 = vtanh.pop %v1778
      %v1782 = vmul.f32 %v1765, %v1779
      %v1783 = vmul.f32 %v1767, %v1780
      %v1784 = vmul.f32 %v1769, %v1781
      %v1785 = vsel %vm900, %v1782, %v878
      %v1786 = vsel %vm901, %v1783, %v879
      %v1787 = vsel %vm902, %v1784, %v880
      %v1788 = vsel %vm900, %v1776, %v881
      %v1789 = vsel %vm901, %v1777, %v882
      %v1790 = vsel %vm902, %v1778, %v883
    $region50: #{tpu_custom_call.1} parent=1 // loop_footer
      %s869 = sadd.s32 %s867, 1
    $region51: #{tpu_custom_call.1} parent=1 // loop_footer_branch
      %866 = sbr.rel target = $region47
    $region52: #{tpu_custom_call.1} parent=1 // loop_exit
      _
    %1791 = vst [vmem:[#allocation11] sm:$0xff] %v872
    %1792 = vst [vmem:[#allocation11 + $0x8] sm:$0xff] %v873
    %1793 = vst [vmem:[#allocation11 + $0x10] sm:$0xff] %v874
    %1794 = vst [vmem:[#allocation12] sm:$0xff] %v875
    %1795 = vst [vmem:[#allocation12 + $0x8] sm:$0xff] %v876
    %1796 = vst [vmem:[#allocation12 + $0x10] sm:$0xff] %v877
    %1797 = vst [vmem:[#allocation14] sm:$0xff] %v878
    %1798 = vst [vmem:[#allocation14 + $0x8] sm:$0xff] %v879
    %1799 = vst [vmem:[#allocation14 + $0x10] sm:$0xff] %v880
    %1800 = vst [vmem:[#allocation15] sm:$0xff] %v881
    %1801 = vst [vmem:[#allocation15 + $0x8] sm:$0xff] %v882
    %1802 = vst [vmem:[#allocation15 + $0x10] sm:$0xff] %v883
    // Predicated region
    $region53: #{tpu_custom_call.1} parent=1 // pred_check
      _
    $region54: #{tpu_custom_call.1} parent=1 // pred_check_branch
      %1804 = sbr.rel (0) target = $region56
    $region55: #{tpu_custom_call.1} parent=1 // pred_region
      %s1806 = ssub.s32 384, 384
      %1807 = vsyncadd [#allocation7], %s1806
      %s1808 = sshll.u32 [#allocation11], 4
      %s1809 = int_to_ptr.vmem [resolvable:$true] %s1808
      %1814 = dma.vmem_to_hbm [thread:$0]  %s1809, 384, %s9, [#allocation7], 128, 128, 8
    $region56: #{tpu_custom_call.1} parent=1 // pred_fallthru
      _
    // Predicated region
    $region57: #{tpu_custom_call.1} parent=1 // pred_check
      _
    $region58: #{tpu_custom_call.1} parent=1 // pred_check_branch
      %1816 = sbr.rel (0) target = $region60
    $region59: #{tpu_custom_call.1} parent=1 // pred_region
      %s1818 = ssub.s32 384, 384
      %1819 = vsyncadd [#allocation13], %s1818
      %s1820 = sshll.u32 [#allocation12], 4
      %s1821 = int_to_ptr.vmem [resolvable:$true] %s1820
      %1826 = dma.vmem_to_hbm [thread:$0]  %s1821, 384, %s10, [#allocation13], 128, 128, 8
    $region60: #{tpu_custom_call.1} parent=1 // pred_fallthru
      _
    // Predicated region
    $region61: #{tpu_custom_call.1} parent=1 // pred_check
      _
    $region62: #{tpu_custom_call.1} parent=1 // pred_check_branch
      %1828 = sbr.rel (0) target = $region64
    $region63: #{tpu_custom_call.1} parent=1 // pred_region
      %s1830 = ssub.s32 384, 384
      %1831 = vsyncadd [#allocation13], %s1830
      %s1832 = sshll.u32 [#allocation14], 4
      %s1833 = int_to_ptr.vmem [resolvable:$true] %s1832
      %1838 = dma.vmem_to_hbm [thread:$0]  %s1833, 384, %s11, [#allocation13], 128, 128, 8
    $region64: #{tpu_custom_call.1} parent=1 // pred_fallthru
      _
    // Predicated region
    $region65: #{tpu_custom_call.1} parent=1 // pred_check
      _
    $region66: #{tpu_custom_call.1} parent=1 // pred_check_branch
      %1840 = sbr.rel (0) target = $region68
    $region67: #{tpu_custom_call.1} parent=1 // pred_region
      %s1842 = ssub.s32 384, 384
      %1843 = vsyncadd [#allocation16], %s1842
      %s1844 = sshll.u32 [#allocation15], 4
      %s1845 = int_to_ptr.vmem [resolvable:$true] %s1844
      %1850 = dma.vmem_to_hbm [thread:$0]  %s1845, 384, %s12, [#allocation16], 128, 128, 8
    $region68: #{tpu_custom_call.1} parent=1 // pred_fallthru
      _
    // Predicated region
    $region69: #{tpu_custom_call.1} parent=1 // pred_check
      _
    $region70: #{tpu_custom_call.1} parent=1 // pred_check_branch
      %1852 = sbr.rel (0) target = $region72
    $region71: #{tpu_custom_call.1} parent=1 // pred_region
      %1853 = dma.done [#allocation7], 384
    $region72: #{tpu_custom_call.1} parent=1 // pred_fallthru
      _
    // Predicated region
    $region73: #{tpu_custom_call.1} parent=1 // pred_check
      _
    $region74: #{tpu_custom_call.1} parent=1 // pred_check_branch
      %1855 = sbr.rel (0) target = $region76
    $region75: #{tpu_custom_call.1} parent=1 // pred_region
      %1856 = dma.done [#allocation13], 384
    $region76: #{tpu_custom_call.1} parent=1 // pred_fallthru
      _
    // Predicated region
    $region77: #{tpu_custom_call.1} parent=1 // pred_check
      _
    $region78: #{tpu_custom_call.1} parent=1 // pred_check_branch
      %1858 = sbr.rel (0) target = $region80
    $region79: #{tpu_custom_call.1} parent=1 // pred_region
      %1859 = dma.done [#allocation13], 384
    $region80: #{tpu_custom_call.1} parent=1 // pred_fallthru
      _
    // Predicated region
    $region81: #{tpu_custom_call.1} parent=1 // pred_check
      _
    $region82: #{tpu_custom_call.1} parent=1 // pred_check_branch
      %1861 = sbr.rel (0) target = $region84
    $region83: #{tpu_custom_call.1} parent=1 // pred_region
      %1862 = dma.done [#allocation16], 384
    $region84: #{tpu_custom_call.1} parent=1 // pred_fallthru
      _
    %1863 = vsyncpa [#allocation6], 1
    %1864 = vsyncpa [#allocation9], 1
    %1865 = vsyncpa [#allocation7], 1
    %1866 = vsyncpa [#allocation13], 1
    %1867 = vsyncpa [#allocation16], 1

</llo_original>
